<compile_context>
chip_gen: v7x
topology: tpu7x:2x2x1
jax: 0.10.0
libtpu: 0.0.40
codegen_flags: <defaults>
</compile_context>

<pallas_src>
import functools
import math

import jax
import jax.numpy as jnp
from jax import lax
from jax.experimental import pallas as pl
from jax.experimental.pallas import tpu as pltpu


def _resblock_kernel(x_ref, w1_ref, w2_ref, b1_ref, b2_ref, red_ref, bcast_ref,
                     alpha_ref, o_ref, *, L, conv_dtype):
    x = x_ref[...].astype(jnp.float32)          # (C, BL): Bt instances packed along lanes
    C, BL = x.shape
    alpha = alpha_ref[0, 0]                     # shared PReLU scalar (nn.PReLU() default)
    red = red_ref[...]                          # (BL, Bt): per-instance mean reduce (1/L)
    bcast = bcast_ref[...]                      # (Bt, BL): per-instance stat broadcast (0/1)

    # Position-within-instance masks for the reflection boundaries (computed once).
    pos = lax.broadcasted_iota(jnp.int32, (1, BL), 1) % L
    is_first = pos == 0
    is_last = pos == (L - 1)

    def conv3(v, w_r, b_r):
        # ReflectionPad1d(1) + Conv1d(kernel_size=3): +/-1 neighbours via XLU lane rolls
        # with a VPU reflect blend at instance boundaries; then 3 tap-wise MXU matmuls
        # accumulated in f32. Bias added as an f32 VPU broadcast (never quantized).
        rm1 = pltpu.roll(v, 1, axis=1)          # [:, j] = v[:, j-1]  (wraps; fixed below)
        rp1 = pltpu.roll(v, BL - 1, axis=1)     # [:, j] = v[:, j+1]  (wraps; fixed below)
        v_left = jnp.where(is_first, rp1, rm1)  # reflect: x[-1] -> x[1]
        v_right = jnp.where(is_last, rm1, rp1)  # reflect: x[L]  -> x[L-2]
        taps = (v_left, v, v_right)
        y = b_r[...]                            # (C, 1) f32, broadcasts over lanes
        for t in range(3):                      # static unroll
            y = y + jnp.dot(w_r[t].astype(conv_dtype), taps[t].astype(conv_dtype),
                            preferred_element_type=jnp.float32)
        return y

    def inst_norm(v, eps=1e-5):
        # Biased per-(channel, instance) mean/var over the L lanes of each packed
        # segment: factored reduce->broadcast matmuls; two-pass d-based variance, f32.
        mu = jnp.dot(jnp.dot(v, red, preferred_element_type=jnp.float32), bcast,
                     preferred_element_type=jnp.float32)
        d = v - mu
        var = jnp.dot(jnp.dot(d * d, red, preferred_element_type=jnp.float32), bcast,
                      preferred_element_type=jnp.float32)
        return d * lax.rsqrt(var + eps)

    def prelu(v):
        return jnp.where(v > 0, v, alpha * v)

    h = prelu(inst_norm(conv3(x, w1_ref, b1_ref)))
    h = inst_norm(conv3(h, w2_ref, b2_ref)) + x          # residual add
    o_ref[...] = prelu(h).astype(o_ref.dtype)


def _tensorcores_per_chip():
    try:
        kind = jax.devices()[0].device_kind.lower()
    except Exception:
        return 1
    return 2 if "v7" in kind else 1


def _choose_batch_tile(n, l, num_cores=1, max_lanes=1024):
    """Return (bt, n_padded): bt instances packed along lanes per grid step."""
    unit = math.lcm(l, 128) // l                  # smallest bt with (bt*l) % 128 == 0
    if unit * l > max_lanes:
        # Long-sequence fallback: one full-array block (always layout-legal).
        # TODO(synk): L-tiled two-pass InstanceNorm so the lane tile stays bounded for
        # very long sequences instead of growing with N*L.
        return n, n
    k_max = max(1, max_lanes // (unit * l))
    divisors = [unit * k for k in range(1, k_max + 1) if n % (unit * k) == 0]
    if divisors:
        if num_cores > 1:
            balanced = [bt for bt in divisors if (n // bt) % num_cores == 0]
            return (max(balanced) if balanced else max(divisors)), n
        return max(divisors), n                   # single TC: one maximal dense tile
    # No exact divisor: zero-pad the batch; minimize padding waste, then prefer bigger bt.
    cands = sorted((-(-n // (unit * k)) * (unit * k) - n, -(unit * k)) for k in range(1, k_max + 1))
    bt = -cands[0][1]
    return bt, -(-n // bt) * bt


def residual_block(x, w1, b1, w2, b2, alpha, *, conv_dtype=jnp.float32, max_lanes=1024):
    """x: (N, C, L) f32. w*: (C, C, 3). b*: (C,). alpha: scalar PReLU slope.

    conv_dtype=jnp.bfloat16 gives bf16 MXU operands (f32 accumulation) on v6e/v7x;
    InstanceNorm stats, bias, and all elementwise math stay in f32.
    """
    N, C, L = x.shape
    K = w1.shape[-1]
    assert K == 3 and w1.shape == (C, C, K) and w2.shape == (C, C, K)
    assert L >= 2, "ReflectionPad1d(1) needs L >= 2"

    num_cores = _tensorcores_per_chip()
    bt, n_pad = _choose_batch_tile(N, L, num_cores, max_lanes)
    bl = bt * L
    steps = n_pad // bt
    grid = (steps,)

    # ---- host-side operand prep (tiny, one-time) -------------------------------
    x_packed = jnp.transpose(x, (1, 0, 2)).reshape(C, N * L)          # batch -> lanes
    if n_pad != N:
        x_packed = jnp.pad(x_packed, ((0, 0), (0, (n_pad - N) * L)))  # zero instances

    w1_taps = jnp.transpose(w1, (2, 0, 1)).astype(conv_dtype)         # (3, Cout, Cin)
    w2_taps = jnp.transpose(w2, (2, 0, 1)).astype(conv_dtype)
    b1c = b1.reshape(C, 1).astype(jnp.float32)
    b2c = b2.reshape(C, 1).astype(jnp.float32)

    seg = jnp.arange(bl) // L
    inst = jnp.arange(bt)
    red = (seg[:, None] == inst[None, :]).astype(jnp.float32) / L     # (bl, bt)
    bcast = (inst[:, None] == seg[None, :]).astype(jnp.float32)       # (bt, bl)

    a = jnp.reshape(jnp.asarray(alpha, jnp.float32), (1, 1))

    itemsize_w = jnp.dtype(conv_dtype).itemsize
    const_bytes = 2 * 3 * C * C * itemsize_w + 2 * C * 4 + 2 * bl * bt * 4
    conv_flops = steps * 2 * 3 * 2 * C * C * bl                       # 6 tap matmuls
    pool_flops = steps * 2 * 4 * 2 * C * bl * bt                      # 8 reduce/bcast dots
    ew_flops = steps * 24 * C * bl
    cost = pl.CostEstimate(
        flops=int(conv_flops + pool_flops + ew_flops),
        transcendentals=int(steps * 2 * C * bt),
        bytes_accessed=int(4 * 2 * n_pad * C * L + const_bytes),
    )
    # Actual VMEM: double-buffered (C, bl) in/out tiles + (conservatively x2) constants.
    alloc_bytes = 2 * 2 * C * bl * 4 + 2 * const_bytes
    vmem_limit = int(min(32 * 2**20, max(16 * 2**20, 4 * alloc_bytes)))

    out_packed = pl.pallas_call(
        functools.partial(_resblock_kernel, L=L, conv_dtype=conv_dtype),
        out_shape=jax.ShapeDtypeStruct((C, n_pad * L), x.dtype),
        grid_spec=pltpu.PrefetchScalarGridSpec(
            num_scalar_prefetch=0,
            grid=grid,
            in_specs=[
                pl.BlockSpec((C, bl), lambda n: (0, n)),              # x tile (lane-packed batch)
                pl.BlockSpec((3, C, C), lambda n: (0, 0, 0)),         # conv1 taps (resident)
                pl.BlockSpec((3, C, C), lambda n: (0, 0, 0)),         # conv2 taps (resident)
                pl.BlockSpec((C, 1), lambda n: (0, 0)),               # bias1 (f32)
                pl.BlockSpec((C, 1), lambda n: (0, 0)),               # bias2 (f32)
                pl.BlockSpec((bl, bt), lambda n: (0, 0)),             # per-instance mean reduce
                pl.BlockSpec((bt, bl), lambda n: (0, 0)),             # per-instance broadcast
                pl.BlockSpec((1, 1), lambda n: (0, 0),
                             memory_space=pltpu.SMEM),                # PReLU alpha (scalar)
            ],
            out_specs=pl.BlockSpec((C, bl), lambda n: (0, n)),
        ),
        compiler_params=pltpu.CompilerParams(
            dimension_semantics=("parallel",),
            vmem_limit_bytes=vmem_limit,
        ),
        cost_estimate=cost,
    )(x_packed, w1_taps, w2_taps, b1c, b2c, red, bcast, a)

    out = jnp.transpose(out_packed.reshape(C, n_pad, L), (1, 0, 2))
    return out[:N] if n_pad != N else out


def _reference(x, w1, b1, w2, b2, alpha):
    """Pure-JAX reference matching the PyTorch forward."""
    def conv(v, w, b):
        vp = jnp.concatenate([v[:, :, 1:2], v, v[:, :, -2:-1]], axis=-1)
        y = lax.conv_general_dilated(vp, w, (1,), 'VALID',
                                     dimension_numbers=('NCW', 'OIW', 'NCW'))
        return y + b[None, :, None]

    def inorm(v, eps=1e-5):
        mu = v.mean(-1, keepdims=True)
        var = ((v - mu) ** 2).mean(-1, keepdims=True)
        return (v - mu) / jnp.sqrt(var + eps)

    def prelu(v):
        return jnp.where(v > 0, v, alpha * v)

    h = prelu(inorm(conv(x, w1, b1)))
    h = inorm(conv(h, w2, b2)) + x
    return prelu(h)


if __name__ == "__main__":
    N, C, L, K = 16, 8, 16, 3   # in_channels == out_channels so the residual add is valid

    key = jax.random.PRNGKey(0)
    k1, k2, k3, k4, k5 = jax.random.split(key, 5)

    bound = 1.0 / (C * K) ** 0.5     # PyTorch-style uniform init bound
    x = jax.random.normal(k1, (N, C, L), dtype=jnp.float32)
    w1 = jax.random.uniform(k2, (C, C, K), jnp.float32, -bound, bound)
    b1 = jax.random.uniform(k3, (C,), jnp.float32, -bound, bound)
    w2 = jax.random.uniform(k4, (C, C, K), jnp.float32, -bound, bound)
    b2 = jax.random.uniform(k5, (C,), jnp.float32, -bound, bound)
    alpha = jnp.float32(0.25)        # nn.PReLU() default init

    ref = _reference(x, w1, b1, w2, b2, alpha)

    out = jax.block_until_ready(residual_block(x, w1, b1, w2, b2, alpha))
    assert out.shape == (N, C, L)
    assert jnp.allclose(out, ref, atol=5e-3, rtol=5e-3), (
        "f32 mismatch vs reference: max|diff|=%e" % float(jnp.max(jnp.abs(out - ref))))

    # bf16 MXU-operand fast path (v6e/v7x); stats, bias, accumulation stay f32.
    out_bf16 = jax.block_until_ready(
        residual_block(x, w1, b1, w2, b2, alpha, conv_dtype=jnp.bfloat16))
    assert jnp.allclose(out_bf16, ref, atol=5e-2, rtol=5e-2), (
        "bf16 mismatch vs reference: max|diff|=%e" % float(jnp.max(jnp.abs(out_bf16 - ref))))

    print("KERNEL_OK")
</pallas_src>

<mosaic_0001>
module attributes {stable_mosaic.version = 11 : i64} {
  func.func @_resblock_kernel(%arg0: i32, %arg1: memref<8x256xf32, #tpu.memory_space<vmem>>, %arg2: memref<3x8x8xf32, #tpu.memory_space<vmem>>, %arg3: memref<3x8x8xf32, #tpu.memory_space<vmem>>, %arg4: memref<8x1xf32, #tpu.memory_space<vmem>>, %arg5: memref<8x1xf32, #tpu.memory_space<vmem>>, %arg6: memref<256x16xf32, #tpu.memory_space<vmem>>, %arg7: memref<16x256xf32, #tpu.memory_space<vmem>>, %arg8: memref<1x1xf32, #tpu.memory_space<smem>>, %arg9: memref<8x256xf32, #tpu.memory_space<vmem>>) attributes {dimension_semantics = [#tpu.dimension_semantics<parallel>], iteration_bounds = array<i64: 1>, scalar_prefetch = 0 : i64, scratch_operands = 0 : i64, tpu.core_type = #tpu.core_type<tc>, window_params = [{transform_indices = @transform_0, window_bounds = array<i64: 8, 256>}, {pipeline_mode = #tpu.pipeline_mode<synchronous>, transform_indices = @transform_1, window_bounds = array<i64: 3, 8, 8>}, {pipeline_mode = #tpu.pipeline_mode<synchronous>, transform_indices = @transform_2, window_bounds = array<i64: 3, 8, 8>}, {pipeline_mode = #tpu.pipeline_mode<synchronous>, transform_indices = @transform_3, window_bounds = array<i64: 8, 1>}, {pipeline_mode = #tpu.pipeline_mode<synchronous>, transform_indices = @transform_4, window_bounds = array<i64: 8, 1>}, {pipeline_mode = #tpu.pipeline_mode<synchronous>, transform_indices = @transform_5, window_bounds = array<i64: 256, 16>}, {pipeline_mode = #tpu.pipeline_mode<synchronous>, transform_indices = @transform_6, window_bounds = array<i64: 16, 256>}, {transform_indices = @transform_7, window_bounds = array<i64: 1, 1>}, {transform_indices = @transform_8, window_bounds = array<i64: 8, 256>}]} {
    %c0 = arith.constant 0 : index
    %c0_0 = arith.constant 0 : index
    %0 = vector.load %arg1[%c0, %c0_0] : memref<8x256xf32, #tpu.memory_space<vmem>>, vector<8x256xf32>
    %c0_1 = arith.constant 0 : index
    %c0_2 = arith.constant 0 : index
    %1 = memref.load %arg8[%c0_1, %c0_2] : memref<1x1xf32, #tpu.memory_space<smem>>
    %c0_3 = arith.constant 0 : index
    %c0_4 = arith.constant 0 : index
    %2 = vector.load %arg6[%c0_3, %c0_4] : memref<256x16xf32, #tpu.memory_space<vmem>>, vector<256x16xf32>
    %c0_5 = arith.constant 0 : index
    %c0_6 = arith.constant 0 : index
    %3 = vector.load %arg7[%c0_5, %c0_6] : memref<16x256xf32, #tpu.memory_space<vmem>>, vector<16x256xf32>
    %4 = tpu.iota {dimensions = array<i32: 1>} : vector<1x256xi32>
    %c16_i32 = arith.constant 16 : i32
    %c0_i32 = arith.constant 0 : i32
    %5 = arith.cmpi eq, %c16_i32, %c0_i32 : i32
    %c1_i32 = arith.constant 1 : i32
    %6 = arith.select %5, %c1_i32, %c16_i32 : i32
    %7 = vector.broadcast %6 : i32 to vector<1x256xi32>
    %8 = arith.remsi %4, %7 : vector<1x256xi32>
    %c0_i32_7 = arith.constant 0 : i32
    %9 = vector.broadcast %c0_i32_7 : i32 to vector<1x256xi32>
    %10 = arith.cmpi ne, %8, %9 : vector<1x256xi32>
    %c0_i32_8 = arith.constant 0 : i32
    %11 = vector.broadcast %c0_i32_8 : i32 to vector<1x256xi32>
    %12 = arith.cmpi slt, %8, %11 : vector<1x256xi32>
    %c0_i32_9 = arith.constant 0 : i32
    %13 = arith.cmpi slt, %6, %c0_i32_9 : i32
    %14 = vector.broadcast %13 : i1 to vector<1x256xi1>
    %15 = vector.broadcast %14 : vector<1x256xi1> to vector<1x256xi1>
    %16 = arith.xori %12, %15 : vector<1x256xi1>
    %17 = arith.andi %16, %10 : vector<1x256xi1>
    %18 = vector.broadcast %6 : i32 to vector<1x256xi32>
    %19 = arith.addi %8, %18 : vector<1x256xi32>
    %20 = arith.select %17, %19, %8 : vector<1x256xi1>, vector<1x256xi32>
    %c0_i32_10 = arith.constant 0 : i32
    %21 = vector.broadcast %c0_i32_10 : i32 to vector<1x256xi32>
    %22 = arith.cmpi eq, %20, %21 : vector<1x256xi32>
    %c15_i32 = arith.constant 15 : i32
    %23 = vector.broadcast %c15_i32 : i32 to vector<1x256xi32>
    %24 = arith.cmpi eq, %20, %23 : vector<1x256xi32>
    %c1_i32_11 = arith.constant 1 : i32
    %25 = tpu.dynamic_rotate %0 by %c1_i32_11 dim 1 : vector<8x256xf32>, i32 -> vector<8x256xf32>
    %c255_i32 = arith.constant 255 : i32
    %26 = tpu.dynamic_rotate %0 by %c255_i32 dim 1 : vector<8x256xf32>, i32 -> vector<8x256xf32>
    %27 = vector.shape_cast %22 : vector<1x256xi1> to vector<1x256xi1>
    %28 = vector.broadcast %27 : vector<1x256xi1> to vector<8x256xi1>
    %29 = arith.select %28, %26, %25 : vector<8x256xi1>, vector<8x256xf32>
    %30 = vector.shape_cast %24 : vector<1x256xi1> to vector<1x256xi1>
    %31 = vector.broadcast %30 : vector<1x256xi1> to vector<8x256xi1>
    %32 = arith.select %31, %25, %26 : vector<8x256xi1>, vector<8x256xf32>
    %c0_12 = arith.constant 0 : index
    %c0_13 = arith.constant 0 : index
    %33 = vector.load %arg4[%c0_12, %c0_13] : memref<8x1xf32, #tpu.memory_space<vmem>>, vector<8x1xf32>
    %c0_14 = arith.constant 0 : index
    %c0_15 = arith.constant 0 : index
    %c0_16 = arith.constant 0 : index
    %34 = vector.load %arg2[%c0_14, %c0_15, %c0_16] : memref<3x8x8xf32, #tpu.memory_space<vmem>>, vector<1x8x8xf32>
    %35 = vector.shape_cast %34 : vector<1x8x8xf32> to vector<8x8xf32>
    %cst = arith.constant dense<0.000000e+00> : vector<8x256xf32>
    %36 = tpu.matmul %35, %29, %cst {dimension_numbers = #tpu.dot_dimension_numbers<[1], [0], [0], [1], [0, 0, 1, 1], [], []>} : vector<8x8xf32>, vector<8x256xf32>, vector<8x256xf32> -> vector<8x256xf32>
    %37 = vector.broadcast %33 : vector<8x1xf32> to vector<8x256xf32>
    %38 = arith.addf %37, %36 : vector<8x256xf32>
    %c1 = arith.constant 1 : index
    %c0_17 = arith.constant 0 : index
    %c0_18 = arith.constant 0 : index
    %39 = vector.load %arg2[%c1, %c0_17, %c0_18] : memref<3x8x8xf32, #tpu.memory_space<vmem>>, vector<1x8x8xf32>
    %40 = vector.shape_cast %39 : vector<1x8x8xf32> to vector<8x8xf32>
    %cst_19 = arith.constant dense<0.000000e+00> : vector<8x256xf32>
    %41 = tpu.matmul %40, %0, %cst_19 {dimension_numbers = #tpu.dot_dimension_numbers<[1], [0], [0], [1], [0, 0, 1, 1], [], []>} : vector<8x8xf32>, vector<8x256xf32>, vector<8x256xf32> -> vector<8x256xf32>
    %42 = arith.addf %38, %41 : vector<8x256xf32>
    %c2 = arith.constant 2 : index
    %c0_20 = arith.constant 0 : index
    %c0_21 = arith.constant 0 : index
    %43 = vector.load %arg2[%c2, %c0_20, %c0_21] : memref<3x8x8xf32, #tpu.memory_space<vmem>>, vector<1x8x8xf32>
    %44 = vector.shape_cast %43 : vector<1x8x8xf32> to vector<8x8xf32>
    %cst_22 = arith.constant dense<0.000000e+00> : vector<8x256xf32>
    %45 = tpu.matmul %44, %32, %cst_22 {dimension_numbers = #tpu.dot_dimension_numbers<[1], [0], [0], [1], [0, 0, 1, 1], [], []>} : vector<8x8xf32>, vector<8x256xf32>, vector<8x256xf32> -> vector<8x256xf32>
    %46 = arith.addf %42, %45 : vector<8x256xf32>
    %cst_23 = arith.constant dense<0.000000e+00> : vector<8x16xf32>
    %47 = tpu.matmul %46, %2, %cst_23 {dimension_numbers = #tpu.dot_dimension_numbers<[1], [0], [0], [1], [0, 0, 1, 1], [], []>} : vector<8x256xf32>, vector<256x16xf32>, vector<8x16xf32> -> vector<8x16xf32>
    %cst_24 = arith.constant dense<0.000000e+00> : vector<8x256xf32>
    %48 = tpu.matmul %47, %3, %cst_24 {dimension_numbers = #tpu.dot_dimension_numbers<[1], [0], [0], [1], [0, 0, 1, 1], [], []>} : vector<8x16xf32>, vector<16x256xf32>, vector<8x256xf32> -> vector<8x256xf32>
    %49 = arith.subf %46, %48 : vector<8x256xf32>
    %50 = arith.mulf %49, %49 : vector<8x256xf32>
    %cst_25 = arith.constant dense<0.000000e+00> : vector<8x16xf32>
    %51 = tpu.matmul %50, %2, %cst_25 {dimension_numbers = #tpu.dot_dimension_numbers<[1], [0], [0], [1], [0, 0, 1, 1], [], []>} : vector<8x256xf32>, vector<256x16xf32>, vector<8x16xf32> -> vector<8x16xf32>
    %cst_26 = arith.constant dense<0.000000e+00> : vector<8x256xf32>
    %52 = tpu.matmul %51, %3, %cst_26 {dimension_numbers = #tpu.dot_dimension_numbers<[1], [0], [0], [1], [0, 0, 1, 1], [], []>} : vector<8x16xf32>, vector<16x256xf32>, vector<8x256xf32> -> vector<8x256xf32>
    %cst_27 = arith.constant 9.99999974E-6 : f32
    %53 = vector.broadcast %cst_27 : f32 to vector<8x256xf32>
    %54 = arith.addf %52, %53 : vector<8x256xf32>
    %55 = math.rsqrt %54 : vector<8x256xf32>
    %56 = arith.mulf %49, %55 : vector<8x256xf32>
    %cst_28 = arith.constant 0.000000e+00 : f32
    %57 = vector.broadcast %cst_28 : f32 to vector<8x256xf32>
    %58 = arith.cmpf ogt, %56, %57 : vector<8x256xf32>
    %59 = vector.broadcast %1 : f32 to vector<8x256xf32>
    %60 = arith.mulf %59, %56 : vector<8x256xf32>
    %61 = arith.select %58, %56, %60 : vector<8x256xi1>, vector<8x256xf32>
    %c1_i32_29 = arith.constant 1 : i32
    %62 = tpu.dynamic_rotate %61 by %c1_i32_29 dim 1 : vector<8x256xf32>, i32 -> vector<8x256xf32>
    %c255_i32_30 = arith.constant 255 : i32
    %63 = tpu.dynamic_rotate %61 by %c255_i32_30 dim 1 : vector<8x256xf32>, i32 -> vector<8x256xf32>
    %64 = vector.shape_cast %22 : vector<1x256xi1> to vector<1x256xi1>
    %65 = vector.broadcast %64 : vector<1x256xi1> to vector<8x256xi1>
    %66 = arith.select %65, %63, %62 : vector<8x256xi1>, vector<8x256xf32>
    %67 = vector.shape_cast %24 : vector<1x256xi1> to vector<1x256xi1>
    %68 = vector.broadcast %67 : vector<1x256xi1> to vector<8x256xi1>
    %69 = arith.select %68, %62, %63 : vector<8x256xi1>, vector<8x256xf32>
    %c0_31 = arith.constant 0 : index
    %c0_32 = arith.constant 0 : index
    %70 = vector.load %arg5[%c0_31, %c0_32] : memref<8x1xf32, #tpu.memory_space<vmem>>, vector<8x1xf32>
    %c0_33 = arith.constant 0 : index
    %c0_34 = arith.constant 0 : index
    %c0_35 = arith.constant 0 : index
    %71 = vector.load %arg3[%c0_33, %c0_34, %c0_35] : memref<3x8x8xf32, #tpu.memory_space<vmem>>, vector<1x8x8xf32>
    %72 = vector.shape_cast %71 : vector<1x8x8xf32> to vector<8x8xf32>
    %cst_36 = arith.constant dense<0.000000e+00> : vector<8x256xf32>
    %73 = tpu.matmul %72, %66, %cst_36 {dimension_numbers = #tpu.dot_dimension_numbers<[1], [0], [0], [1], [0, 0, 1, 1], [], []>} : vector<8x8xf32>, vector<8x256xf32>, vector<8x256xf32> -> vector<8x256xf32>
    %74 = vector.broadcast %70 : vector<8x1xf32> to vector<8x256xf32>
    %75 = arith.addf %74, %73 : vector<8x256xf32>
    %c1_37 = arith.constant 1 : index
    %c0_38 = arith.constant 0 : index
    %c0_39 = arith.constant 0 : index
    %76 = vector.load %arg3[%c1_37, %c0_38, %c0_39] : memref<3x8x8xf32, #tpu.memory_space<vmem>>, vector<1x8x8xf32>
    %77 = vector.shape_cast %76 : vector<1x8x8xf32> to vector<8x8xf32>
    %cst_40 = arith.constant dense<0.000000e+00> : vector<8x256xf32>
    %78 = tpu.matmul %77, %61, %cst_40 {dimension_numbers = #tpu.dot_dimension_numbers<[1], [0], [0], [1], [0, 0, 1, 1], [], []>} : vector<8x8xf32>, vector<8x256xf32>, vector<8x256xf32> -> vector<8x256xf32>
    %79 = arith.addf %75, %78 : vector<8x256xf32>
    %c2_41 = arith.constant 2 : index
    %c0_42 = arith.constant 0 : index
    %c0_43 = arith.constant 0 : index
    %80 = vector.load %arg3[%c2_41, %c0_42, %c0_43] : memref<3x8x8xf32, #tpu.memory_space<vmem>>, vector<1x8x8xf32>
    %81 = vector.shape_cast %80 : vector<1x8x8xf32> to vector<8x8xf32>
    %cst_44 = arith.constant dense<0.000000e+00> : vector<8x256xf32>
    %82 = tpu.matmul %81, %69, %cst_44 {dimension_numbers = #tpu.dot_dimension_numbers<[1], [0], [0], [1], [0, 0, 1, 1], [], []>} : vector<8x8xf32>, vector<8x256xf32>, vector<8x256xf32> -> vector<8x256xf32>
    %83 = arith.addf %79, %82 : vector<8x256xf32>
    %cst_45 = arith.constant dense<0.000000e+00> : vector<8x16xf32>
    %84 = tpu.matmul %83, %2, %cst_45 {dimension_numbers = #tpu.dot_dimension_numbers<[1], [0], [0], [1], [0, 0, 1, 1], [], []>} : vector<8x256xf32>, vector<256x16xf32>, vector<8x16xf32> -> vector<8x16xf32>
    %cst_46 = arith.constant dense<0.000000e+00> : vector<8x256xf32>
    %85 = tpu.matmul %84, %3, %cst_46 {dimension_numbers = #tpu.dot_dimension_numbers<[1], [0], [0], [1], [0, 0, 1, 1], [], []>} : vector<8x16xf32>, vector<16x256xf32>, vector<8x256xf32> -> vector<8x256xf32>
    %86 = arith.subf %83, %85 : vector<8x256xf32>
    %87 = arith.mulf %86, %86 : vector<8x256xf32>
    %cst_47 = arith.constant dense<0.000000e+00> : vector<8x16xf32>
    %88 = tpu.matmul %87, %2, %cst_47 {dimension_numbers = #tpu.dot_dimension_numbers<[1], [0], [0], [1], [0, 0, 1, 1], [], []>} : vector<8x256xf32>, vector<256x16xf32>, vector<8x16xf32> -> vector<8x16xf32>
    %cst_48 = arith.constant dense<0.000000e+00> : vector<8x256xf32>
    %89 = tpu.matmul %88, %3, %cst_48 {dimension_numbers = #tpu.dot_dimension_numbers<[1], [0], [0], [1], [0, 0, 1, 1], [], []>} : vector<8x16xf32>, vector<16x256xf32>, vector<8x256xf32> -> vector<8x256xf32>
    %cst_49 = arith.constant 9.99999974E-6 : f32
    %90 = vector.broadcast %cst_49 : f32 to vector<8x256xf32>
    %91 = arith.addf %89, %90 : vector<8x256xf32>
    %92 = math.rsqrt %91 : vector<8x256xf32>
    %93 = arith.mulf %86, %92 : vector<8x256xf32>
    %94 = arith.addf %93, %0 : vector<8x256xf32>
    %cst_50 = arith.constant 0.000000e+00 : f32
    %95 = vector.broadcast %cst_50 : f32 to vector<8x256xf32>
    %96 = arith.cmpf ogt, %94, %95 : vector<8x256xf32>
    %97 = vector.broadcast %1 : f32 to vector<8x256xf32>
    %98 = arith.mulf %97, %94 : vector<8x256xf32>
    %99 = arith.select %96, %94, %98 : vector<8x256xi1>, vector<8x256xf32>
    %c0_51 = arith.constant 0 : index
    %c0_52 = arith.constant 0 : index
    %100 = vector.load %arg9[%c0_51, %c0_52] : memref<8x256xf32, #tpu.memory_space<vmem>>, vector<8x256xf32>
    tpu.vector_store %arg9[%c0_51, %c0_52], %99 {strides = array<i32>} : memref<8x256xf32, #tpu.memory_space<vmem>>, vector<8x256xf32>,
    return
  }
  func.func @transform_0(%arg0: i32) -> (i32, i32) {
    %c0_i32 = arith.constant 0 : i32
    %c0_i32_0 = arith.constant 0 : i32
    return %c0_i32, %arg0 : i32, i32
  }
  func.func @transform_1(%arg0: i32) -> (i32, i32, i32) {
    %c0_i32 = arith.constant 0 : i32
    %c0_i32_0 = arith.constant 0 : i32
    %c0_i32_1 = arith.constant 0 : i32
    %c0_i32_2 = arith.constant 0 : i32
    return %c0_i32, %c0_i32_0, %c0_i32_1 : i32, i32, i32
  }
  func.func @transform_2(%arg0: i32) -> (i32, i32, i32) {
    %c0_i32 = arith.constant 0 : i32
    %c0_i32_0 = arith.constant 0 : i32
    %c0_i32_1 = arith.constant 0 : i32
    %c0_i32_2 = arith.constant 0 : i32
    return %c0_i32, %c0_i32_0, %c0_i32_1 : i32, i32, i32
  }
  func.func @transform_3(%arg0: i32) -> (i32, i32) {
    %c0_i32 = arith.constant 0 : i32
    %c0_i32_0 = arith.constant 0 : i32
    %c0_i32_1 = arith.constant 0 : i32
    return %c0_i32, %c0_i32_0 : i32, i32
  }
  func.func @transform_4(%arg0: i32) -> (i32, i32) {
    %c0_i32 = arith.constant 0 : i32
    %c0_i32_0 = arith.constant 0 : i32
    %c0_i32_1 = arith.constant 0 : i32
    return %c0_i32, %c0_i32_0 : i32, i32
  }
  func.func @transform_5(%arg0: i32) -> (i32, i32) {
    %c0_i32 = arith.constant 0 : i32
    %c0_i32_0 = arith.constant 0 : i32
    %c0_i32_1 = arith.constant 0 : i32
    return %c0_i32, %c0_i32_0 : i32, i32
  }
  func.func @transform_6(%arg0: i32) -> (i32, i32) {
    %c0_i32 = arith.constant 0 : i32
    %c0_i32_0 = arith.constant 0 : i32
    %c0_i32_1 = arith.constant 0 : i32
    return %c0_i32, %c0_i32_0 : i32, i32
  }
  func.func @transform_7(%arg0: i32) -> (i32, i32) {
    %c0_i32 = arith.constant 0 : i32
    %c0_i32_0 = arith.constant 0 : i32
    %c0_i32_1 = arith.constant 0 : i32
    return %c0_i32, %c0_i32_0 : i32, i32
  }
  func.func @transform_8(%arg0: i32) -> (i32, i32) {
    %c0_i32 = arith.constant 0 : i32
    %c0_i32_0 = arith.constant 0 : i32
    return %c0_i32, %arg0 : i32, i32
  }
}

</mosaic_0001>

<llo_original>
// kernel: tpu_custom_call.1
$region0: #{tpu_custom_call.1}
  #allocation0 [shape = 'u32[]', space=smem, size = 0x4, offset = 0x4, fixed_abs, tag = 'smem constant byte address 0x4 - core index']
  #allocation1 [shape = 'u32[144,128]{1,0:T(1,128)}', space=vmem, size = 0x12000, scoped, tag = 'internal scratch']
  #allocation2 [shape = 'f32[1,1]{1,0:T(1,128)S(6)}', space=smem, size = 0x200, scoped, tag = 'scoped memory for tpu_custom_call.1']
  %s0 = inlined_call_operand.vmem [shape: f32[8,256], index: 0, kind: input, shape index: {}]
  %s1 = inlined_call_operand.vmem [shape: f32[3,8,8], index: 1, kind: input, shape index: {}]
  %s2 = inlined_call_operand.vmem [shape: f32[3,8,8], index: 2, kind: input, shape index: {}]
  %s3 = inlined_call_operand.vmem [shape: f32[8,1], index: 3, kind: input, shape index: {}]
  %s4 = inlined_call_operand.vmem [shape: f32[8,1], index: 4, kind: input, shape index: {}]
  %s5 = inlined_call_operand.vmem [shape: f32[256,16], index: 5, kind: input, shape index: {}]
  %s6 = inlined_call_operand.vmem [shape: f32[16,256], index: 6, kind: input, shape index: {}]
  %s7 = inlined_call_operand.<no memory space> [shape: f32[1,1], index: 7, kind: input, shape index: {}]
  %s8 = inlined_call_operand.hbm [shape: f32[8,256], index: 8, kind: output, shape index: {}]
  %s9 = sld [smem:[#allocation0]]
  $region42: #{tpu_custom_call.1} parent=0
    _
  %s11 = ssub.s32 1, %s9
  %s12 = scalar_select 0, %s11, %s9
  %13 = sst [smem:[#allocation2]] %s7
  $region1: #{tpu_custom_call.1} parent=0
    #allocation3 [shape = 'u8[8192]{0}', space=vmem, size = 0x2000, scoped, tag = 'output window, operand 0, single buffered']
    #allocation4 [shape = 's32[1]{0}', space=sflag, size = 0x4, scoped, tag = 'scoped memory for tpu_custom_call.1']
    %14 = vsyncpa [#allocation4], 0
    // Predicated region
    $region2: #{tpu_custom_call.1} parent=1 // pred_check
      _
    $region3: #{tpu_custom_call.1} parent=1 // pred_check_branch
      %16 = sbr.rel (0) target = $region5
    $region4: #{tpu_custom_call.1} parent=1 // pred_region
      _
    $region5: #{tpu_custom_call.1} parent=1 // pred_fallthru
      _
    // Predicated region
    $region6: #{tpu_custom_call.1} parent=1 // pred_check
      _
    $region7: #{tpu_custom_call.1} parent=1 // pred_check_branch
      %18 = sbr.rel (0) target = $region9
    $region8: #{tpu_custom_call.1} parent=1 // pred_region
      _
    $region9: #{tpu_custom_call.1} parent=1 // pred_fallthru
      _
    // Predicated region
    $region10: #{tpu_custom_call.1} parent=1 // pred_check
      _
    $region11: #{tpu_custom_call.1} parent=1 // pred_check_branch
      %20 = sbr.rel (0) target = $region13
    $region12: #{tpu_custom_call.1} parent=1 // pred_region
      _
    $region13: #{tpu_custom_call.1} parent=1 // pred_fallthru
      _
    // Predicated region
    $region14: #{tpu_custom_call.1} parent=1 // pred_check
      _
    $region15: #{tpu_custom_call.1} parent=1 // pred_check_branch
      %22 = sbr.rel (0) target = $region17
    $region16: #{tpu_custom_call.1} parent=1 // pred_region
      _
    $region17: #{tpu_custom_call.1} parent=1 // pred_fallthru
      _
    // Predicated region
    $region18: #{tpu_custom_call.1} parent=1 // pred_check
      _
    $region19: #{tpu_custom_call.1} parent=1 // pred_check_branch
      %24 = sbr.rel (0) target = $region21
    $region20: #{tpu_custom_call.1} parent=1 // pred_region
      _
    $region21: #{tpu_custom_call.1} parent=1 // pred_fallthru
      _
    // Predicated region
    $region22: #{tpu_custom_call.1} parent=1 // pred_check
      _
    $region23: #{tpu_custom_call.1} parent=1 // pred_check_branch
      %26 = sbr.rel (0) target = $region25
    $region24: #{tpu_custom_call.1} parent=1 // pred_region
      _
    $region25: #{tpu_custom_call.1} parent=1 // pred_fallthru
      _
    // Predicated region
    $region26: #{tpu_custom_call.1} parent=1 // pred_check
      _
    $region27: #{tpu_custom_call.1} parent=1 // pred_check_branch
      %28 = sbr.rel (0) target = $region29
    $region28: #{tpu_custom_call.1} parent=1 // pred_region
      _
    $region29: #{tpu_custom_call.1} parent=1 // pred_fallthru
      _
    // Predicated region
    $region30: #{tpu_custom_call.1} parent=1 // pred_check
      _
    $region31: #{tpu_custom_call.1} parent=1 // pred_check_branch
      %30 = sbr.rel (0) target = $region33
    $region32: #{tpu_custom_call.1} parent=1 // pred_region
      _
    $region33: #{tpu_custom_call.1} parent=1 // pred_fallthru
      _
    %v31 = vld [vmem:[%s0] sm:$0xff]
    %v32 = vld [vmem:[%s0 + $0x8] sm:$0xff]
    %s33 = sld [smem:[#allocation2]]
    %v34 = vld [vmem:[%s5] sm:$0xff]
    %v35 = vld [vmem:[%s5 + $0x8] sm:$0xff]
    %v36 = vld [vmem:[%s5 + $0x10] sm:$0xff]
    %v37 = vld [vmem:[%s5 + $0x18] sm:$0xff]
    %v38 = vld [vmem:[%s5 + $0x20] sm:$0xff]
    %v39 = vld [vmem:[%s5 + $0x28] sm:$0xff]
    %v40 = vld [vmem:[%s5 + $0x30] sm:$0xff]
    %v41 = vld [vmem:[%s5 + $0x38] sm:$0xff]
    %v42 = vld [vmem:[%s5 + $0x40] sm:$0xff]
    %v43 = vld [vmem:[%s5 + $0x48] sm:$0xff]
    %v44 = vld [vmem:[%s5 + $0x50] sm:$0xff]
    %v45 = vld [vmem:[%s5 + $0x58] sm:$0xff]
    %v46 = vld [vmem:[%s5 + $0x60] sm:$0xff]
    %v47 = vld [vmem:[%s5 + $0x68] sm:$0xff]
    %v48 = vld [vmem:[%s5 + $0x70] sm:$0xff]
    %v49 = vld [vmem:[%s5 + $0x78] sm:$0xff]
    %v50 = vld [vmem:[%s5 + $0x80] sm:$0xff]
    %v51 = vld [vmem:[%s5 + $0x88] sm:$0xff]
    %v52 = vld [vmem:[%s5 + $0x90] sm:$0xff]
    %v53 = vld [vmem:[%s5 + $0x98] sm:$0xff]
    %v54 = vld [vmem:[%s5 + $0xa0] sm:$0xff]
    %v55 = vld [vmem:[%s5 + $0xa8] sm:$0xff]
    %v56 = vld [vmem:[%s5 + $0xb0] sm:$0xff]
    %v57 = vld [vmem:[%s5 + $0xb8] sm:$0xff]
    %v58 = vld [vmem:[%s5 + $0xc0] sm:$0xff]
    %v59 = vld [vmem:[%s5 + $0xc8] sm:$0xff]
    %v60 = vld [vmem:[%s5 + $0xd0] sm:$0xff]
    %v61 = vld [vmem:[%s5 + $0xd8] sm:$0xff]
    %v62 = vld [vmem:[%s5 + $0xe0] sm:$0xff]
    %v63 = vld [vmem:[%s5 + $0xe8] sm:$0xff]
    %v64 = vld [vmem:[%s5 + $0xf0] sm:$0xff]
    %v65 = vld [vmem:[%s5 + $0xf8] sm:$0xff]
    %v66 = vld [vmem:[%s6] sm:$0xff]
    %v67 = vld [vmem:[%s6 + $0x8] sm:$0xff]
    %v68 = vld [vmem:[%s6 + $0x10] sm:$0xff]
    %v69 = vld [vmem:[%s6 + $0x18] sm:$0xff]
    %v70 = vlaneseq
    %v71 = vand.u32 %v70, 127
    %v72 = vadd.s32 %v71, 128
    %vm73 = vcmp.lt.s32.totalorder %v71, 0
    %v74 = vsub.s32 0, %v71
    %v75 = vsel %vm73, %v74, %v71
    %v76 = vshrl.u32 %v75, 4
    %v77 = vand.u32 %v75, 15
    %v78 = vsub.s32 0, %v77
    %v79 = vsel %vm73, %v78, %v77
    %vm80 = vcmp.lt.s32.totalorder %v72, 0
    %v81 = vsub.s32 0, %v72
    %v82 = vsel %vm80, %v81, %v72
    %v83 = vshrl.u32 %v82, 4
    %v84 = vand.u32 %v82, 15
    %v85 = vsub.s32 0, %v84
    %v86 = vsel %vm80, %v85, %v84
    %vm87 = vcmp.ne.s32.totalorder %v79, 0
    %vm88 = vcmp.ne.s32.totalorder %v86, 0
    %vm89 = vcmp.lt.s32.totalorder %v79, 0
    %vm90 = vcmp.lt.s32.totalorder %v86, 0
    %vm91 = vmand %vm89, %vm87
    %vm92 = vmand %vm90, %vm88
    %v93 = vadd.s32 %v79, 16
    %v94 = vadd.s32 %v86, 16
    %v95 = vsel %vm91, %v93, %v79
    %v96 = vsel %vm92, %v94, %v86
    %vm97 = vcmp.eq.s32.totalorder %v95, 0
    %vm98 = vcmp.eq.s32.totalorder %v96, 0
    %vm99 = vcmp.eq.s32.totalorder %v95, 15
    %vm100 = vcmp.eq.s32.totalorder %v96, 15
    %101 = vrot.lane.b32.xlu0 %v31, 1
    %v102 = vpop.permute.xlu0 %101
    %103 = vrot.lane.b32.xlu0 %v32, 1
    %v104 = vpop.permute.xlu0 %103
    %vm105 = vcmp.lt.s32.totalorder %v71, 1
    %v106 = vsel %vm105, %v102, %v104
    %v107 = vsel %vm105, %v104, %v102
    %108 = vrot.lane.b32.xlu0 %v31, 127
    %v109 = vpop.permute.xlu0 %108
    %110 = vrot.lane.b32.xlu0 %v32, 127
    %v111 = vpop.permute.xlu0 %110
    %vm112 = vcmp.lt.s32.totalorder %v71, 127
    %v113 = vsel %vm112, %v109, %v111
    %v114 = vsel %vm112, %v111, %v109
    %v115 = vsel %vm97, 1, 0
    %v116 = vsel %vm98, 1, 0
    %vm117 = vcmp.eq.s32.totalorder %v115, 1
    %vm118 = vcmp.eq.s32.totalorder %v116, 1
    %v119 = vsel %vm117, %v113, %v107
    %v120 = vsel %vm118, %v114, %v106
    %v121 = vsel %vm99, 1, 0
    %v122 = vsel %vm100, 1, 0
    %vm123 = vcmp.eq.s32.totalorder %v121, 1
    %vm124 = vcmp.eq.s32.totalorder %v122, 1
    %v125 = vsel %vm123, %v107, %v113
    %v126 = vsel %vm124, %v106, %v114
    %v127 = vld [vmem:[%s3] sm:$0xff]
    %v128 = vld [vmem:[%s1] sm:$0xff]
    %vm129 = vcmask 64512
    %v131 = vsel %vm129, %v128, 0
    %133 = vmatprep.subr.mxu0 %v120
    %134 = vmatpush1.msra.mxu0 %v119
    %135 = vmatprep.subr.mxu0 0.0
    %136 = vmatpush1.msra.mxu0 0.0
    %137 = vmatprep.subr.mxu0 0.0
    %138 = vmatpush1.msra.mxu0 0.0
    %139 = vmatprep.subr.mxu0 0.0
    %140 = vmatpush1.msra.mxu0 0.0
    %141 = vmatprep.subr.mxu0 0.0
    %142 = vmatpush1.msra.mxu0 0.0
    %143 = vmatprep.subr.mxu0 0.0
    %144 = vmatpush1.msra.mxu0 0.0
    %145 = vmatprep.subr.mxu0 0.0
    %146 = vmatpush1.msra.mxu0 0.0
    %147 = vmatprep.subr.mxu0 0.0
    %148 = vmatpush1.msra.mxu0 0.0
    %149 = vmatprep.subr.mxu0 0.0
    %150 = vmatpush1.msra.mxu0 0.0
    %151 = vmatprep.subr.mxu0 0.0
    %152 = vmatpush1.msra.mxu0 0.0
    %153 = vmatprep.subr.mxu0 0.0
    %154 = vmatpush1.msra.mxu0 0.0
    %155 = vmatprep.subr.mxu0 0.0
    %156 = vmatpush1.msra.mxu0 0.0
    %157 = vmatprep.subr.mxu0 0.0
    %158 = vmatpush1.msra.mxu0 0.0
    %159 = vmatprep.subr.mxu0 0.0
    %160 = vmatpush1.msra.mxu0 0.0
    %161 = vmatprep.subr.mxu0 0.0
    %162 = vmatpush1.msra.mxu0 0.0
    %163 = vmatprep.subr.mxu0 0.0
    %164 = vmatpush1.msra.mxu0 0.0
    %165 = vmatprep.subr.mxu0 0.0
    %166 = vmatpush1.msra.mxu0 0.0
    %167 = vmatprep.subr.mxu0 0.0
    %168 = vmatpush1.msra.mxu0 0.0
    %169 = vmatprep.subr.mxu0 0.0
    %170 = vmatpush1.msra.mxu0 0.0
    %171 = vmatprep.subr.mxu0 0.0
    %172 = vmatpush1.msra.mxu0 0.0
    %173 = vmatprep.subr.mxu0 0.0
    %174 = vmatpush1.msra.mxu0 0.0
    %175 = vmatprep.subr.mxu0 0.0
    %176 = vmatpush1.msra.mxu0 0.0
    %177 = vmatprep.subr.mxu0 0.0
    %178 = vmatpush1.msra.mxu0 0.0
    %179 = vmatprep.subr.mxu0 0.0
    %180 = vmatpush1.msra.mxu0 0.0
    %181 = vmatprep.subr.mxu0 0.0
    %182 = vmatpush1.msra.mxu0 0.0
    %183 = vmatprep.subr.mxu0 0.0
    %184 = vmatpush1.msra.mxu0 0.0
    %185 = vmatprep.subr.mxu0 0.0
    %186 = vmatpush1.msra.mxu0 0.0
    %187 = vmatprep.subr.mxu0 0.0
    %188 = vmatpush1.msra.mxu0 0.0
    %189 = vmatprep.subr.mxu0 0.0
    %190 = vmatpush1.msra.mxu0 0.0
    %191 = vmatprep.subr.mxu0 0.0
    %192 = vmatpush1.msra.mxu0 0.0
    %193 = vmatprep.subr.mxu0 0.0
    %194 = vmatpush1.msra.mxu0 0.0
    %195 = vmatprep.subr.mxu0 0.0
    %196 = vmatpush1.msra.mxu0 0.0
    %197 = vmatprep.mubr.f32.mxu0 0.0
    %198 = vmatmul.mubr.f32.gmra.mrb[0].mxu0 %v131
    %v199 = vpop.f32.mrb[0].mxu0
    %v200 = vadd.f32 0.0, %v199
    %v201 = vpop.f32.mrb[0].mxu0
    %v202 = vadd.f32 0.0, %v201
    %203 = vdwg.mxu0
    %205 = vset.pattern.permute.xlu0 0
    %206 = vperm.xlu0 %205, %v127
    %v207 = vpop.permute.xlu0 %206
    %v209 = vadd.f32 %v207, %v200
    %v210 = vadd.f32 %v207, %v202
    %s211 = scalar_lea.vmem %s1, 8
    %v212 = vld [vmem:[%s211] sm:$0xff]
    %v214 = vsel %vm129, %v212, 0
    %216 = vmatprep.subr.mxu0 %v32
    %217 = vmatpush1.msra.mxu0 %v31
    %218 = vmatprep.subr.mxu0 0.0
    %219 = vmatpush1.msra.mxu0 0.0
    %220 = vmatprep.subr.mxu0 0.0
    %221 = vmatpush1.msra.mxu0 0.0
    %222 = vmatprep.subr.mxu0 0.0
    %223 = vmatpush1.msra.mxu0 0.0
    %224 = vmatprep.subr.mxu0 0.0
    %225 = vmatpush1.msra.mxu0 0.0
    %226 = vmatprep.subr.mxu0 0.0
    %227 = vmatpush1.msra.mxu0 0.0
    %228 = vmatprep.subr.mxu0 0.0
    %229 = vmatpush1.msra.mxu0 0.0
    %230 = vmatprep.subr.mxu0 0.0
    %231 = vmatpush1.msra.mxu0 0.0
    %232 = vmatprep.subr.mxu0 0.0
    %233 = vmatpush1.msra.mxu0 0.0
    %234 = vmatprep.subr.mxu0 0.0
    %235 = vmatpush1.msra.mxu0 0.0
    %236 = vmatprep.subr.mxu0 0.0
    %237 = vmatpush1.msra.mxu0 0.0
    %238 = vmatprep.subr.mxu0 0.0
    %239 = vmatpush1.msra.mxu0 0.0
    %240 = vmatprep.subr.mxu0 0.0
    %241 = vmatpush1.msra.mxu0 0.0
    %242 = vmatprep.subr.mxu0 0.0
    %243 = vmatpush1.msra.mxu0 0.0
    %244 = vmatprep.subr.mxu0 0.0
    %245 = vmatpush1.msra.mxu0 0.0
    %246 = vmatprep.subr.mxu0 0.0
    %247 = vmatpush1.msra.mxu0 0.0
    %248 = vmatprep.subr.mxu0 0.0
    %249 = vmatpush1.msra.mxu0 0.0
    %250 = vmatprep.subr.mxu0 0.0
    %251 = vmatpush1.msra.mxu0 0.0
    %252 = vmatprep.subr.mxu0 0.0
    %253 = vmatpush1.msra.mxu0 0.0
    %254 = vmatprep.subr.mxu0 0.0
    %255 = vmatpush1.msra.mxu0 0.0
    %256 = vmatprep.subr.mxu0 0.0
    %257 = vmatpush1.msra.mxu0 0.0
    %258 = vmatprep.subr.mxu0 0.0
    %259 = vmatpush1.msra.mxu0 0.0
    %260 = vmatprep.subr.mxu0 0.0
    %261 = vmatpush1.msra.mxu0 0.0
    %262 = vmatprep.subr.mxu0 0.0
    %263 = vmatpush1.msra.mxu0 0.0
    %264 = vmatprep.subr.mxu0 0.0
    %265 = vmatpush1.msra.mxu0 0.0
    %266 = vmatprep.subr.mxu0 0.0
    %267 = vmatpush1.msra.mxu0 0.0
    %268 = vmatprep.subr.mxu0 0.0
    %269 = vmatpush1.msra.mxu0 0.0
    %270 = vmatprep.subr.mxu0 0.0
    %271 = vmatpush1.msra.mxu0 0.0
    %272 = vmatprep.subr.mxu0 0.0
    %273 = vmatpush1.msra.mxu0 0.0
    %274 = vmatprep.subr.mxu0 0.0
    %275 = vmatpush1.msra.mxu0 0.0
    %276 = vmatprep.subr.mxu0 0.0
    %277 = vmatpush1.msra.mxu0 0.0
    %278 = vmatprep.subr.mxu0 0.0
    %279 = vmatpush1.msra.mxu0 0.0
    %280 = vmatprep.mubr.f32.mxu0 0.0
    %281 = vmatmul.mubr.f32.gmra.mrb[0].mxu0 %v214
    %v282 = vpop.f32.mrb[0].mxu0
    %v283 = vadd.f32 0.0, %v282
    %v284 = vpop.f32.mrb[0].mxu0
    %v285 = vadd.f32 0.0, %v284
    %286 = vdwg.mxu0
    %v287 = vadd.f32 %v209, %v283
    %v288 = vadd.f32 %v210, %v285
    %s289 = scalar_lea.vmem %s1, 16
    %v290 = vld [vmem:[%s289] sm:$0xff]
    %v292 = vsel %vm129, %v290, 0
    %294 = vmatprep.subr.mxu0 %v126
    %295 = vmatpush1.msra.mxu0 %v125
    %296 = vmatprep.subr.mxu0 0.0
    %297 = vmatpush1.msra.mxu0 0.0
    %298 = vmatprep.subr.mxu0 0.0
    %299 = vmatpush1.msra.mxu0 0.0
    %300 = vmatprep.subr.mxu0 0.0
    %301 = vmatpush1.msra.mxu0 0.0
    %302 = vmatprep.subr.mxu0 0.0
    %303 = vmatpush1.msra.mxu0 0.0
    %304 = vmatprep.subr.mxu0 0.0
    %305 = vmatpush1.msra.mxu0 0.0
    %306 = vmatprep.subr.mxu0 0.0
    %307 = vmatpush1.msra.mxu0 0.0
    %308 = vmatprep.subr.mxu0 0.0
    %309 = vmatpush1.msra.mxu0 0.0
    %310 = vmatprep.subr.mxu0 0.0
    %311 = vmatpush1.msra.mxu0 0.0
    %312 = vmatprep.subr.mxu0 0.0
    %313 = vmatpush1.msra.mxu0 0.0
    %314 = vmatprep.subr.mxu0 0.0
    %315 = vmatpush1.msra.mxu0 0.0
    %316 = vmatprep.subr.mxu0 0.0
    %317 = vmatpush1.msra.mxu0 0.0
    %318 = vmatprep.subr.mxu0 0.0
    %319 = vmatpush1.msra.mxu0 0.0
    %320 = vmatprep.subr.mxu0 0.0
    %321 = vmatpush1.msra.mxu0 0.0
    %322 = vmatprep.subr.mxu0 0.0
    %323 = vmatpush1.msra.mxu0 0.0
    %324 = vmatprep.subr.mxu0 0.0
    %325 = vmatpush1.msra.mxu0 0.0
    %326 = vmatprep.subr.mxu0 0.0
    %327 = vmatpush1.msra.mxu0 0.0
    %328 = vmatprep.subr.mxu0 0.0
    %329 = vmatpush1.msra.mxu0 0.0
    %330 = vmatprep.subr.mxu0 0.0
    %331 = vmatpush1.msra.mxu0 0.0
    %332 = vmatprep.subr.mxu0 0.0
    %333 = vmatpush1.msra.mxu0 0.0
    %334 = vmatprep.subr.mxu0 0.0
    %335 = vmatpush1.msra.mxu0 0.0
    %336 = vmatprep.subr.mxu0 0.0
    %337 = vmatpush1.msra.mxu0 0.0
    %338 = vmatprep.subr.mxu0 0.0
    %339 = vmatpush1.msra.mxu0 0.0
    %340 = vmatprep.subr.mxu0 0.0
    %341 = vmatpush1.msra.mxu0 0.0
    %342 = vmatprep.subr.mxu0 0.0
    %343 = vmatpush1.msra.mxu0 0.0
    %344 = vmatprep.subr.mxu0 0.0
    %345 = vmatpush1.msra.mxu0 0.0
    %346 = vmatprep.subr.mxu0 0.0
    %347 = vmatpush1.msra.mxu0 0.0
    %348 = vmatprep.subr.mxu0 0.0
    %349 = vmatpush1.msra.mxu0 0.0
    %350 = vmatprep.subr.mxu0 0.0
    %351 = vmatpush1.msra.mxu0 0.0
    %352 = vmatprep.subr.mxu0 0.0
    %353 = vmatpush1.msra.mxu0 0.0
    %354 = vmatprep.subr.mxu0 0.0
    %355 = vmatpush1.msra.mxu0 0.0
    %356 = vmatprep.subr.mxu0 0.0
    %357 = vmatpush1.msra.mxu0 0.0
    %358 = vmatprep.mubr.f32.mxu0 0.0
    %359 = vmatmul.mubr.f32.gmra.mrb[0].mxu0 %v292
    %v360 = vpop.f32.mrb[0].mxu0
    %v361 = vadd.f32 0.0, %v360
    %v362 = vpop.f32.mrb[0].mxu0
    %v363 = vadd.f32 0.0, %v362
    %364 = vdwg.mxu0
    %v365 = vadd.f32 %v287, %v361
    %v366 = vadd.f32 %v288, %v363
    %367 = vmatprep.subr.mxu0 0.0
    %368 = vmatpush1.msra.mxu0 %v34
    %369 = vmatprep.subr.mxu0 0.0
    %370 = vmatpush1.msra.mxu0 %v35
    %371 = vmatprep.subr.mxu0 0.0
    %372 = vmatpush1.msra.mxu0 %v36
    %373 = vmatprep.subr.mxu0 0.0
    %374 = vmatpush1.msra.mxu0 %v37
    %375 = vmatprep.subr.mxu0 0.0
    %376 = vmatpush1.msra.mxu0 %v38
    %377 = vmatprep.subr.mxu0 0.0
    %378 = vmatpush1.msra.mxu0 %v39
    %379 = vmatprep.subr.mxu0 0.0
    %380 = vmatpush1.msra.mxu0 %v40
    %381 = vmatprep.subr.mxu0 0.0
    %382 = vmatpush1.msra.mxu0 %v41
    %383 = vmatprep.subr.mxu0 0.0
    %384 = vmatpush1.msra.mxu0 %v42
    %385 = vmatprep.subr.mxu0 0.0
    %386 = vmatpush1.msra.mxu0 %v43
    %387 = vmatprep.subr.mxu0 0.0
    %388 = vmatpush1.msra.mxu0 %v44
    %389 = vmatprep.subr.mxu0 0.0
    %390 = vmatpush1.msra.mxu0 %v45
    %391 = vmatprep.subr.mxu0 0.0
    %392 = vmatpush1.msra.mxu0 %v46
    %393 = vmatprep.subr.mxu0 0.0
    %394 = vmatpush1.msra.mxu0 %v47
    %395 = vmatprep.subr.mxu0 0.0
    %396 = vmatpush1.msra.mxu0 %v48
    %397 = vmatprep.subr.mxu0 0.0
    %398 = vmatpush1.msra.mxu0 %v49
    %399 = vmatprep.subr.mxu0 0.0
    %400 = vmatpush1.msra.mxu0 %v50
    %401 = vmatprep.subr.mxu0 0.0
    %402 = vmatpush1.msra.mxu0 %v51
    %403 = vmatprep.subr.mxu0 0.0
    %404 = vmatpush1.msra.mxu0 %v52
    %405 = vmatprep.subr.mxu0 0.0
    %406 = vmatpush1.msra.mxu0 %v53
    %407 = vmatprep.subr.mxu0 0.0
    %408 = vmatpush1.msra.mxu0 %v54
    %409 = vmatprep.subr.mxu0 0.0
    %410 = vmatpush1.msra.mxu0 %v55
    %411 = vmatprep.subr.mxu0 0.0
    %412 = vmatpush1.msra.mxu0 %v56
    %413 = vmatprep.subr.mxu0 0.0
    %414 = vmatpush1.msra.mxu0 %v57
    %415 = vmatprep.subr.mxu0 0.0
    %416 = vmatpush1.msra.mxu0 %v58
    %417 = vmatprep.subr.mxu0 0.0
    %418 = vmatpush1.msra.mxu0 %v59
    %419 = vmatprep.subr.mxu0 0.0
    %420 = vmatpush1.msra.mxu0 %v60
    %421 = vmatprep.subr.mxu0 0.0
    %422 = vmatpush1.msra.mxu0 %v61
    %423 = vmatprep.subr.mxu0 0.0
    %424 = vmatpush1.msra.mxu0 %v62
    %425 = vmatprep.subr.mxu0 0.0
    %426 = vmatpush1.msra.mxu0 %v63
    %427 = vmatprep.subr.mxu0 0.0
    %428 = vmatpush1.msra.mxu0 %v64
    %429 = vmatprep.subr.mxu0 0.0
    %430 = vmatpush1.msra.mxu0 %v65
    %431 = vmatprep.mubr.f32.mxu0 %v366
    %432 = vmatmul.mubr.f32.gmra.mrb[0].mxu0 %v365
    %v433 = vpop.f32.mrb[0].mxu0
    %v434 = vadd.f32 0.0, %v433
    %v435 = vpop.f32.mrb[0].mxu0
    %436 = vdwg.mxu0
    %vm437 = vcmask 130048
    %v439 = vsel %vm437, %v434, 0
    %441 = vmatprep.subr.mxu0 %v67
    %442 = vmatpush1.msra.mxu0 %v66
    %443 = vmatprep.subr.mxu0 %v69
    %444 = vmatpush1.msra.mxu0 %v68
    %445 = vmatprep.subr.mxu0 0.0
    %446 = vmatpush1.msra.mxu0 0.0
    %447 = vmatprep.subr.mxu0 0.0
    %448 = vmatpush1.msra.mxu0 0.0
    %449 = vmatprep.subr.mxu0 0.0
    %450 = vmatpush1.msra.mxu0 0.0
    %451 = vmatprep.subr.mxu0 0.0
    %452 = vmatpush1.msra.mxu0 0.0
    %453 = vmatprep.subr.mxu0 0.0
    %454 = vmatpush1.msra.mxu0 0.0
    %455 = vmatprep.subr.mxu0 0.0
    %456 = vmatpush1.msra.mxu0 0.0
    %457 = vmatprep.subr.mxu0 0.0
    %458 = vmatpush1.msra.mxu0 0.0
    %459 = vmatprep.subr.mxu0 0.0
    %460 = vmatpush1.msra.mxu0 0.0
    %461 = vmatprep.subr.mxu0 0.0
    %462 = vmatpush1.msra.mxu0 0.0
    %463 = vmatprep.subr.mxu0 0.0
    %464 = vmatpush1.msra.mxu0 0.0
    %465 = vmatprep.subr.mxu0 0.0
    %466 = vmatpush1.msra.mxu0 0.0
    %467 = vmatprep.subr.mxu0 0.0
    %468 = vmatpush1.msra.mxu0 0.0
    %469 = vmatprep.subr.mxu0 0.0
    %470 = vmatpush1.msra.mxu0 0.0
    %471 = vmatprep.subr.mxu0 0.0
    %472 = vmatpush1.msra.mxu0 0.0
    %473 = vmatprep.subr.mxu0 0.0
    %474 = vmatpush1.msra.mxu0 0.0
    %475 = vmatprep.subr.mxu0 0.0
    %476 = vmatpush1.msra.mxu0 0.0
    %477 = vmatprep.subr.mxu0 0.0
    %478 = vmatpush1.msra.mxu0 0.0
    %479 = vmatprep.subr.mxu0 0.0
    %480 = vmatpush1.msra.mxu0 0.0
    %481 = vmatprep.subr.mxu0 0.0
    %482 = vmatpush1.msra.mxu0 0.0
    %483 = vmatprep.subr.mxu0 0.0
    %484 = vmatpush1.msra.mxu0 0.0
    %485 = vmatprep.subr.mxu0 0.0
    %486 = vmatpush1.msra.mxu0 0.0
    %487 = vmatprep.subr.mxu0 0.0
    %488 = vmatpush1.msra.mxu0 0.0
    %489 = vmatprep.subr.mxu0 0.0
    %490 = vmatpush1.msra.mxu0 0.0
    %491 = vmatprep.subr.mxu0 0.0
    %492 = vmatpush1.msra.mxu0 0.0
    %493 = vmatprep.subr.mxu0 0.0
    %494 = vmatpush1.msra.mxu0 0.0
    %495 = vmatprep.subr.mxu0 0.0
    %496 = vmatpush1.msra.mxu0 0.0
    %497 = vmatprep.subr.mxu0 0.0
    %498 = vmatpush1.msra.mxu0 0.0
    %499 = vmatprep.subr.mxu0 0.0
    %500 = vmatpush1.msra.mxu0 0.0
    %501 = vmatprep.subr.mxu0 0.0
    %502 = vmatpush1.msra.mxu0 0.0
    %503 = vmatprep.subr.mxu0 0.0
    %504 = vmatpush1.msra.mxu0 0.0
    %505 = vmatprep.mubr.f32.mxu0 0.0
    %506 = vmatmul.mubr.f32.gmra.mrb[0].mxu0 %v439
    %v507 = vpop.f32.mrb[0].mxu0
    %v508 = vadd.f32 0.0, %v507
    %v509 = vpop.f32.mrb[0].mxu0
    %v510 = vadd.f32 0.0, %v509
    %511 = vdwg.mxu0
    %v512 = vsub.f32 %v365, %v508
    %v513 = vsub.f32 %v366, %v510
    %v514 = vmul.f32 %v512, %v512
    %v515 = vmul.f32 %v513, %v513
    %516 = vmatprep.subr.mxu0 0.0
    %517 = vmatpush1.msra.mxu0 %v34
    %518 = vmatprep.subr.mxu0 0.0
    %519 = vmatpush1.msra.mxu0 %v35
    %520 = vmatprep.subr.mxu0 0.0
    %521 = vmatpush1.msra.mxu0 %v36
    %522 = vmatprep.subr.mxu0 0.0
    %523 = vmatpush1.msra.mxu0 %v37
    %524 = vmatprep.subr.mxu0 0.0
    %525 = vmatpush1.msra.mxu0 %v38
    %526 = vmatprep.subr.mxu0 0.0
    %527 = vmatpush1.msra.mxu0 %v39
    %528 = vmatprep.subr.mxu0 0.0
    %529 = vmatpush1.msra.mxu0 %v40
    %530 = vmatprep.subr.mxu0 0.0
    %531 = vmatpush1.msra.mxu0 %v41
    %532 = vmatprep.subr.mxu0 0.0
    %533 = vmatpush1.msra.mxu0 %v42
    %534 = vmatprep.subr.mxu0 0.0
    %535 = vmatpush1.msra.mxu0 %v43
    %536 = vmatprep.subr.mxu0 0.0
    %537 = vmatpush1.msra.mxu0 %v44
    %538 = vmatprep.subr.mxu0 0.0
    %539 = vmatpush1.msra.mxu0 %v45
    %540 = vmatprep.subr.mxu0 0.0
    %541 = vmatpush1.msra.mxu0 %v46
    %542 = vmatprep.subr.mxu0 0.0
    %543 = vmatpush1.msra.mxu0 %v47
    %544 = vmatprep.subr.mxu0 0.0
    %545 = vmatpush1.msra.mxu0 %v48
    %546 = vmatprep.subr.mxu0 0.0
    %547 = vmatpush1.msra.mxu0 %v49
    %548 = vmatprep.subr.mxu0 0.0
    %549 = vmatpush1.msra.mxu0 %v50
    %550 = vmatprep.subr.mxu0 0.0
    %551 = vmatpush1.msra.mxu0 %v51
    %552 = vmatprep.subr.mxu0 0.0
    %553 = vmatpush1.msra.mxu0 %v52
    %554 = vmatprep.subr.mxu0 0.0
    %555 = vmatpush1.msra.mxu0 %v53
    %556 = vmatprep.subr.mxu0 0.0
    %557 = vmatpush1.msra.mxu0 %v54
    %558 = vmatprep.subr.mxu0 0.0
    %559 = vmatpush1.msra.mxu0 %v55
    %560 = vmatprep.subr.mxu0 0.0
    %561 = vmatpush1.msra.mxu0 %v56
    %562 = vmatprep.subr.mxu0 0.0
    %563 = vmatpush1.msra.mxu0 %v57
    %564 = vmatprep.subr.mxu0 0.0
    %565 = vmatpush1.msra.mxu0 %v58
    %566 = vmatprep.subr.mxu0 0.0
    %567 = vmatpush1.msra.mxu0 %v59
    %568 = vmatprep.subr.mxu0 0.0
    %569 = vmatpush1.msra.mxu0 %v60
    %570 = vmatprep.subr.mxu0 0.0
    %571 = vmatpush1.msra.mxu0 %v61
    %572 = vmatprep.subr.mxu0 0.0
    %573 = vmatpush1.msra.mxu0 %v62
    %574 = vmatprep.subr.mxu0 0.0
    %575 = vmatpush1.msra.mxu0 %v63
    %576 = vmatprep.subr.mxu0 0.0
    %577 = vmatpush1.msra.mxu0 %v64
    %578 = vmatprep.subr.mxu0 0.0
    %579 = vmatpush1.msra.mxu0 %v65
    %580 = vmatprep.mubr.f32.mxu0 %v515
    %581 = vmatmul.mubr.f32.gmra.mrb[0].mxu0 %v514
    %v582 = vpop.f32.mrb[0].mxu0
    %v583 = vadd.f32 0.0, %v582
    %v584 = vpop.f32.mrb[0].mxu0
    %585 = vdwg.mxu0
    %v587 = vsel %vm437, %v583, 0
    %589 = vmatprep.subr.mxu0 %v67
    %590 = vmatpush1.msra.mxu0 %v66
    %591 = vmatprep.subr.mxu0 %v69
    %592 = vmatpush1.msra.mxu0 %v68
    %593 = vmatprep.subr.mxu0 0.0
    %594 = vmatpush1.msra.mxu0 0.0
    %595 = vmatprep.subr.mxu0 0.0
    %596 = vmatpush1.msra.mxu0 0.0
    %597 = vmatprep.subr.mxu0 0.0
    %598 = vmatpush1.msra.mxu0 0.0
    %599 = vmatprep.subr.mxu0 0.0
    %600 = vmatpush1.msra.mxu0 0.0
    %601 = vmatprep.subr.mxu0 0.0
    %602 = vmatpush1.msra.mxu0 0.0
    %603 = vmatprep.subr.mxu0 0.0
    %604 = vmatpush1.msra.mxu0 0.0
    %605 = vmatprep.subr.mxu0 0.0
    %606 = vmatpush1.msra.mxu0 0.0
    %607 = vmatprep.subr.mxu0 0.0
    %608 = vmatpush1.msra.mxu0 0.0
    %609 = vmatprep.subr.mxu0 0.0
    %610 = vmatpush1.msra.mxu0 0.0
    %611 = vmatprep.subr.mxu0 0.0
    %612 = vmatpush1.msra.mxu0 0.0
    %613 = vmatprep.subr.mxu0 0.0
    %614 = vmatpush1.msra.mxu0 0.0
    %615 = vmatprep.subr.mxu0 0.0
    %616 = vmatpush1.msra.mxu0 0.0
    %617 = vmatprep.subr.mxu0 0.0
    %618 = vmatpush1.msra.mxu0 0.0
    %619 = vmatprep.subr.mxu0 0.0
    %620 = vmatpush1.msra.mxu0 0.0
    %621 = vmatprep.subr.mxu0 0.0
    %622 = vmatpush1.msra.mxu0 0.0
    %623 = vmatprep.subr.mxu0 0.0
    %624 = vmatpush1.msra.mxu0 0.0
    %625 = vmatprep.subr.mxu0 0.0
    %626 = vmatpush1.msra.mxu0 0.0
    %627 = vmatprep.subr.mxu0 0.0
    %628 = vmatpush1.msra.mxu0 0.0
    %629 = vmatprep.subr.mxu0 0.0
    %630 = vmatpush1.msra.mxu0 0.0
    %631 = vmatprep.subr.mxu0 0.0
    %632 = vmatpush1.msra.mxu0 0.0
    %633 = vmatprep.subr.mxu0 0.0
    %634 = vmatpush1.msra.mxu0 0.0
    %635 = vmatprep.subr.mxu0 0.0
    %636 = vmatpush1.msra.mxu0 0.0
    %637 = vmatprep.subr.mxu0 0.0
    %638 = vmatpush1.msra.mxu0 0.0
    %639 = vmatprep.subr.mxu0 0.0
    %640 = vmatpush1.msra.mxu0 0.0
    %641 = vmatprep.subr.mxu0 0.0
    %642 = vmatpush1.msra.mxu0 0.0
    %643 = vmatprep.subr.mxu0 0.0
    %644 = vmatpush1.msra.mxu0 0.0
    %645 = vmatprep.subr.mxu0 0.0
    %646 = vmatpush1.msra.mxu0 0.0
    %647 = vmatprep.subr.mxu0 0.0
    %648 = vmatpush1.msra.mxu0 0.0
    %649 = vmatprep.subr.mxu0 0.0
    %650 = vmatpush1.msra.mxu0 0.0
    %651 = vmatprep.subr.mxu0 0.0
    %652 = vmatpush1.msra.mxu0 0.0
    %653 = vmatprep.mubr.f32.mxu0 0.0
    %654 = vmatmul.mubr.f32.gmra.mrb[0].mxu0 %v587
    %v655 = vpop.f32.mrb[0].mxu0
    %v656 = vadd.f32 1e-05, %v655
    %v657 = vpop.f32.mrb[0].mxu0
    %v658 = vadd.f32 1e-05, %v657
    %659 = vdwg.mxu0
    %v660 = vrsqrt.pop %v656
    %v661 = vrsqrt.pop %v658
    %v662 = vmul.f32 %v512, %v660
    %v663 = vmul.f32 %v513, %v661
    %vm664 = vcmp.gt.f32.partialorder %v662, 0.0
    %vm665 = vcmp.gt.f32.partialorder %v663, 0.0
    %v666 = vstv %s33
    %v667 = vmul.f32 %v666, %v662
    %v668 = vmul.f32 %v666, %v663
    %v669 = vsel %vm664, %v662, %v667
    %v670 = vsel %vm665, %v663, %v668
    %671 = vrot.lane.b32.xlu0 %v669, 1
    %v672 = vpop.permute.xlu0 %671
    %673 = vrot.lane.b32.xlu0 %v670, 1
    %v674 = vpop.permute.xlu0 %673
    %v675 = vsel %vm105, %v672, %v674
    %v676 = vsel %vm105, %v674, %v672
    %677 = vrot.lane.b32.xlu0 %v669, 127
    %v678 = vpop.permute.xlu0 %677
    %679 = vrot.lane.b32.xlu0 %v670, 127
    %v680 = vpop.permute.xlu0 %679
    %v681 = vsel %vm112, %v678, %v680
    %v682 = vsel %vm112, %v680, %v678
    %v683 = vsel %vm117, %v681, %v676
    %v684 = vsel %vm118, %v682, %v675
    %v685 = vsel %vm123, %v676, %v681
    %v686 = vsel %vm124, %v675, %v682
    %v687 = vld [vmem:[%s4] sm:$0xff]
    %v688 = vld [vmem:[%s2] sm:$0xff]
    %v690 = vsel %vm129, %v688, 0
    %692 = vmatprep.subr.mxu0 %v684
    %693 = vmatpush1.msra.mxu0 %v683
    %694 = vmatprep.subr.mxu0 0.0
    %695 = vmatpush1.msra.mxu0 0.0
    %696 = vmatprep.subr.mxu0 0.0
    %697 = vmatpush1.msra.mxu0 0.0
    %698 = vmatprep.subr.mxu0 0.0
    %699 = vmatpush1.msra.mxu0 0.0
    %700 = vmatprep.subr.mxu0 0.0
    %701 = vmatpush1.msra.mxu0 0.0
    %702 = vmatprep.subr.mxu0 0.0
    %703 = vmatpush1.msra.mxu0 0.0
    %704 = vmatprep.subr.mxu0 0.0
    %705 = vmatpush1.msra.mxu0 0.0
    %706 = vmatprep.subr.mxu0 0.0
    %707 = vmatpush1.msra.mxu0 0.0
    %708 = vmatprep.subr.mxu0 0.0
    %709 = vmatpush1.msra.mxu0 0.0
    %710 = vmatprep.subr.mxu0 0.0
    %711 = vmatpush1.msra.mxu0 0.0
    %712 = vmatprep.subr.mxu0 0.0
    %713 = vmatpush1.msra.mxu0 0.0
    %714 = vmatprep.subr.mxu0 0.0
    %715 = vmatpush1.msra.mxu0 0.0
    %716 = vmatprep.subr.mxu0 0.0
    %717 = vmatpush1.msra.mxu0 0.0
    %718 = vmatprep.subr.mxu0 0.0
    %719 = vmatpush1.msra.mxu0 0.0
    %720 = vmatprep.subr.mxu0 0.0
    %721 = vmatpush1.msra.mxu0 0.0
    %722 = vmatprep.subr.mxu0 0.0
    %723 = vmatpush1.msra.mxu0 0.0
    %724 = vmatprep.subr.mxu0 0.0
    %725 = vmatpush1.msra.mxu0 0.0
    %726 = vmatprep.subr.mxu0 0.0
    %727 = vmatpush1.msra.mxu0 0.0
    %728 = vmatprep.subr.mxu0 0.0
    %729 = vmatpush1.msra.mxu0 0.0
    %730 = vmatprep.subr.mxu0 0.0
    %731 = vmatpush1.msra.mxu0 0.0
    %732 = vmatprep.subr.mxu0 0.0
    %733 = vmatpush1.msra.mxu0 0.0
    %734 = vmatprep.subr.mxu0 0.0
    %735 = vmatpush1.msra.mxu0 0.0
    %736 = vmatprep.subr.mxu0 0.0
    %737 = vmatpush1.msra.mxu0 0.0
    %738 = vmatprep.subr.mxu0 0.0
    %739 = vmatpush1.msra.mxu0 0.0
    %740 = vmatprep.subr.mxu0 0.0
    %741 = vmatpush1.msra.mxu0 0.0
    %742 = vmatprep.subr.mxu0 0.0
    %743 = vmatpush1.msra.mxu0 0.0
    %744 = vmatprep.subr.mxu0 0.0
    %745 = vmatpush1.msra.mxu0 0.0
    %746 = vmatprep.subr.mxu0 0.0
    %747 = vmatpush1.msra.mxu0 0.0
    %748 = vmatprep.subr.mxu0 0.0
    %749 = vmatpush1.msra.mxu0 0.0
    %750 = vmatprep.subr.mxu0 0.0
    %751 = vmatpush1.msra.mxu0 0.0
    %752 = vmatprep.subr.mxu0 0.0
    %753 = vmatpush1.msra.mxu0 0.0
    %754 = vmatprep.subr.mxu0 0.0
    %755 = vmatpush1.msra.mxu0 0.0
    %756 = vmatprep.mubr.f32.mxu0 0.0
    %757 = vmatmul.mubr.f32.gmra.mrb[0].mxu0 %v690
    %v758 = vpop.f32.mrb[0].mxu0
    %v759 = vadd.f32 0.0, %v758
    %v760 = vpop.f32.mrb[0].mxu0
    %v761 = vadd.f32 0.0, %v760
    %762 = vdwg.mxu0
    %764 = vset.pattern.permute.xlu0 0
    %765 = vperm.xlu0 %764, %v687
    %v766 = vpop.permute.xlu0 %765
    %v768 = vadd.f32 %v766, %v759
    %v769 = vadd.f32 %v766, %v761
    %s770 = scalar_lea.vmem %s2, 8
    %v771 = vld [vmem:[%s770] sm:$0xff]
    %v773 = vsel %vm129, %v771, 0
    %775 = vmatprep.subr.mxu0 %v670
    %776 = vmatpush1.msra.mxu0 %v669
    %777 = vmatprep.subr.mxu0 0.0
    %778 = vmatpush1.msra.mxu0 0.0
    %779 = vmatprep.subr.mxu0 0.0
    %780 = vmatpush1.msra.mxu0 0.0
    %781 = vmatprep.subr.mxu0 0.0
    %782 = vmatpush1.msra.mxu0 0.0
    %783 = vmatprep.subr.mxu0 0.0
    %784 = vmatpush1.msra.mxu0 0.0
    %785 = vmatprep.subr.mxu0 0.0
    %786 = vmatpush1.msra.mxu0 0.0
    %787 = vmatprep.subr.mxu0 0.0
    %788 = vmatpush1.msra.mxu0 0.0
    %789 = vmatprep.subr.mxu0 0.0
    %790 = vmatpush1.msra.mxu0 0.0
    %791 = vmatprep.subr.mxu0 0.0
    %792 = vmatpush1.msra.mxu0 0.0
    %793 = vmatprep.subr.mxu0 0.0
    %794 = vmatpush1.msra.mxu0 0.0
    %795 = vmatprep.subr.mxu0 0.0
    %796 = vmatpush1.msra.mxu0 0.0
    %797 = vmatprep.subr.mxu0 0.0
    %798 = vmatpush1.msra.mxu0 0.0
    %799 = vmatprep.subr.mxu0 0.0
    %800 = vmatpush1.msra.mxu0 0.0
    %801 = vmatprep.subr.mxu0 0.0
    %802 = vmatpush1.msra.mxu0 0.0
    %803 = vmatprep.subr.mxu0 0.0
    %804 = vmatpush1.msra.mxu0 0.0
    %805 = vmatprep.subr.mxu0 0.0
    %806 = vmatpush1.msra.mxu0 0.0
    %807 = vmatprep.subr.mxu0 0.0
    %808 = vmatpush1.msra.mxu0 0.0
    %809 = vmatprep.subr.mxu0 0.0
    %810 = vmatpush1.msra.mxu0 0.0
    %811 = vmatprep.subr.mxu0 0.0
    %812 = vmatpush1.msra.mxu0 0.0
    %813 = vmatprep.subr.mxu0 0.0
    %814 = vmatpush1.msra.mxu0 0.0
    %815 = vmatprep.subr.mxu0 0.0
    %816 = vmatpush1.msra.mxu0 0.0
    %817 = vmatprep.subr.mxu0 0.0
    %818 = vmatpush1.msra.mxu0 0.0
    %819 = vmatprep.subr.mxu0 0.0
    %820 = vmatpush1.msra.mxu0 0.0
    %821 = vmatprep.subr.mxu0 0.0
    %822 = vmatpush1.msra.mxu0 0.0
    %823 = vmatprep.subr.mxu0 0.0
    %824 = vmatpush1.msra.mxu0 0.0
    %825 = vmatprep.subr.mxu0 0.0
    %826 = vmatpush1.msra.mxu0 0.0
    %827 = vmatprep.subr.mxu0 0.0
    %828 = vmatpush1.msra.mxu0 0.0
    %829 = vmatprep.subr.mxu0 0.0
    %830 = vmatpush1.msra.mxu0 0.0
    %831 = vmatprep.subr.mxu0 0.0
    %832 = vmatpush1.msra.mxu0 0.0
    %833 = vmatprep.subr.mxu0 0.0
    %834 = vmatpush1.msra.mxu0 0.0
    %835 = vmatprep.subr.mxu0 0.0
    %836 = vmatpush1.msra.mxu0 0.0
    %837 = vmatprep.subr.mxu0 0.0
    %838 = vmatpush1.msra.mxu0 0.0
    %839 = vmatprep.mubr.f32.mxu0 0.0
    %840 = vmatmul.mubr.f32.gmra.mrb[0].mxu0 %v773
    %v841 = vpop.f32.mrb[0].mxu0
    %v842 = vadd.f32 0.0, %v841
    %v843 = vpop.f32.mrb[0].mxu0
    %v844 = vadd.f32 0.0, %v843
    %845 = vdwg.mxu0
    %v846 = vadd.f32 %v768, %v842
    %v847 = vadd.f32 %v769, %v844
    %s848 = scalar_lea.vmem %s2, 16
    %v849 = vld [vmem:[%s848] sm:$0xff]
    %v851 = vsel %vm129, %v849, 0
    %853 = vmatprep.subr.mxu0 %v686
    %854 = vmatpush1.msra.mxu0 %v685
    %855 = vmatprep.subr.mxu0 0.0
    %856 = vmatpush1.msra.mxu0 0.0
    %857 = vmatprep.subr.mxu0 0.0
    %858 = vmatpush1.msra.mxu0 0.0
    %859 = vmatprep.subr.mxu0 0.0
    %860 = vmatpush1.msra.mxu0 0.0
    %861 = vmatprep.subr.mxu0 0.0
    %862 = vmatpush1.msra.mxu0 0.0
    %863 = vmatprep.subr.mxu0 0.0
    %864 = vmatpush1.msra.mxu0 0.0
    %865 = vmatprep.subr.mxu0 0.0
    %866 = vmatpush1.msra.mxu0 0.0
    %867 = vmatprep.subr.mxu0 0.0
    %868 = vmatpush1.msra.mxu0 0.0
    %869 = vmatprep.subr.mxu0 0.0
    %870 = vmatpush1.msra.mxu0 0.0
    %871 = vmatprep.subr.mxu0 0.0
    %872 = vmatpush1.msra.mxu0 0.0
    %873 = vmatprep.subr.mxu0 0.0
    %874 = vmatpush1.msra.mxu0 0.0
    %875 = vmatprep.subr.mxu0 0.0
    %876 = vmatpush1.msra.mxu0 0.0
    %877 = vmatprep.subr.mxu0 0.0
    %878 = vmatpush1.msra.mxu0 0.0
    %879 = vmatprep.subr.mxu0 0.0
    %880 = vmatpush1.msra.mxu0 0.0
    %881 = vmatprep.subr.mxu0 0.0
    %882 = vmatpush1.msra.mxu0 0.0
    %883 = vmatprep.subr.mxu0 0.0
    %884 = vmatpush1.msra.mxu0 0.0
    %885 = vmatprep.subr.mxu0 0.0
    %886 = vmatpush1.msra.mxu0 0.0
    %887 = vmatprep.subr.mxu0 0.0
    %888 = vmatpush1.msra.mxu0 0.0
    %889 = vmatprep.subr.mxu0 0.0
    %890 = vmatpush1.msra.mxu0 0.0
    %891 = vmatprep.subr.mxu0 0.0
    %892 = vmatpush1.msra.mxu0 0.0
    %893 = vmatprep.subr.mxu0 0.0
    %894 = vmatpush1.msra.mxu0 0.0
    %895 = vmatprep.subr.mxu0 0.0
    %896 = vmatpush1.msra.mxu0 0.0
    %897 = vmatprep.subr.mxu0 0.0
    %898 = vmatpush1.msra.mxu0 0.0
    %899 = vmatprep.subr.mxu0 0.0
    %900 = vmatpush1.msra.mxu0 0.0
    %901 = vmatprep.subr.mxu0 0.0
    %902 = vmatpush1.msra.mxu0 0.0
    %903 = vmatprep.subr.mxu0 0.0
    %904 = vmatpush1.msra.mxu0 0.0
    %905 = vmatprep.subr.mxu0 0.0
    %906 = vmatpush1.msra.mxu0 0.0
    %907 = vmatprep.subr.mxu0 0.0
    %908 = vmatpush1.msra.mxu0 0.0
    %909 = vmatprep.subr.mxu0 0.0
    %910 = vmatpush1.msra.mxu0 0.0
    %911 = vmatprep.subr.mxu0 0.0
    %912 = vmatpush1.msra.mxu0 0.0
    %913 = vmatprep.subr.mxu0 0.0
    %914 = vmatpush1.msra.mxu0 0.0
    %915 = vmatprep.subr.mxu0 0.0
    %916 = vmatpush1.msra.mxu0 0.0
    %917 = vmatprep.mubr.f32.mxu0 0.0
    %918 = vmatmul.mubr.f32.gmra.mrb[0].mxu0 %v851
    %v919 = vpop.f32.mrb[0].mxu0
    %v920 = vadd.f32 0.0, %v919
    %v921 = vpop.f32.mrb[0].mxu0
    %v922 = vadd.f32 0.0, %v921
    %923 = vdwg.mxu0
    %v924 = vadd.f32 %v846, %v920
    %v925 = vadd.f32 %v847, %v922
    %926 = vmatprep.subr.mxu0 0.0
    %927 = vmatpush1.msra.mxu0 %v34
    %928 = vmatprep.subr.mxu0 0.0
    %929 = vmatpush1.msra.mxu0 %v35
    %930 = vmatprep.subr.mxu0 0.0
    %931 = vmatpush1.msra.mxu0 %v36
    %932 = vmatprep.subr.mxu0 0.0
    %933 = vmatpush1.msra.mxu0 %v37
    %934 = vmatprep.subr.mxu0 0.0
    %935 = vmatpush1.msra.mxu0 %v38
    %936 = vmatprep.subr.mxu0 0.0
    %937 = vmatpush1.msra.mxu0 %v39
    %938 = vmatprep.subr.mxu0 0.0
    %939 = vmatpush1.msra.mxu0 %v40
    %940 = vmatprep.subr.mxu0 0.0
    %941 = vmatpush1.msra.mxu0 %v41
    %942 = vmatprep.subr.mxu0 0.0
    %943 = vmatpush1.msra.mxu0 %v42
    %944 = vmatprep.subr.mxu0 0.0
    %945 = vmatpush1.msra.mxu0 %v43
    %946 = vmatprep.subr.mxu0 0.0
    %947 = vmatpush1.msra.mxu0 %v44
    %948 = vmatprep.subr.mxu0 0.0
    %949 = vmatpush1.msra.mxu0 %v45
    %950 = vmatprep.subr.mxu0 0.0
    %951 = vmatpush1.msra.mxu0 %v46
    %952 = vmatprep.subr.mxu0 0.0
    %953 = vmatpush1.msra.mxu0 %v47
    %954 = vmatprep.subr.mxu0 0.0
    %955 = vmatpush1.msra.mxu0 %v48
    %956 = vmatprep.subr.mxu0 0.0
    %957 = vmatpush1.msra.mxu0 %v49
    %958 = vmatprep.subr.mxu0 0.0
    %959 = vmatpush1.msra.mxu0 %v50
    %960 = vmatprep.subr.mxu0 0.0
    %961 = vmatpush1.msra.mxu0 %v51
    %962 = vmatprep.subr.mxu0 0.0
    %963 = vmatpush1.msra.mxu0 %v52
    %964 = vmatprep.subr.mxu0 0.0
    %965 = vmatpush1.msra.mxu0 %v53
    %966 = vmatprep.subr.mxu0 0.0
    %967 = vmatpush1.msra.mxu0 %v54
    %968 = vmatprep.subr.mxu0 0.0
    %969 = vmatpush1.msra.mxu0 %v55
    %970 = vmatprep.subr.mxu0 0.0
    %971 = vmatpush1.msra.mxu0 %v56
    %972 = vmatprep.subr.mxu0 0.0
    %973 = vmatpush1.msra.mxu0 %v57
    %974 = vmatprep.subr.mxu0 0.0
    %975 = vmatpush1.msra.mxu0 %v58
    %976 = vmatprep.subr.mxu0 0.0
    %977 = vmatpush1.msra.mxu0 %v59
    %978 = vmatprep.subr.mxu0 0.0
    %979 = vmatpush1.msra.mxu0 %v60
    %980 = vmatprep.subr.mxu0 0.0
    %981 = vmatpush1.msra.mxu0 %v61
    %982 = vmatprep.subr.mxu0 0.0
    %983 = vmatpush1.msra.mxu0 %v62
    %984 = vmatprep.subr.mxu0 0.0
    %985 = vmatpush1.msra.mxu0 %v63
    %986 = vmatprep.subr.mxu0 0.0
    %987 = vmatpush1.msra.mxu0 %v64
    %988 = vmatprep.subr.mxu0 0.0
    %989 = vmatpush1.msra.mxu0 %v65
    %990 = vmatprep.mubr.f32.mxu0 %v925
    %991 = vmatmul.mubr.f32.gmra.mrb[0].mxu0 %v924
    %v992 = vpop.f32.mrb[0].mxu0
    %v993 = vadd.f32 0.0, %v992
    %v994 = vpop.f32.mrb[0].mxu0
    %995 = vdwg.mxu0
    %v997 = vsel %vm437, %v993, 0
    %999 = vmatprep.subr.mxu0 %v67
    %1000 = vmatpush1.msra.mxu0 %v66
    %1001 = vmatprep.subr.mxu0 %v69
    %1002 = vmatpush1.msra.mxu0 %v68
    %1003 = vmatprep.subr.mxu0 0.0
    %1004 = vmatpush1.msra.mxu0 0.0
    %1005 = vmatprep.subr.mxu0 0.0
    %1006 = vmatpush1.msra.mxu0 0.0
    %1007 = vmatprep.subr.mxu0 0.0
    %1008 = vmatpush1.msra.mxu0 0.0
    %1009 = vmatprep.subr.mxu0 0.0
    %1010 = vmatpush1.msra.mxu0 0.0
    %1011 = vmatprep.subr.mxu0 0.0
    %1012 = vmatpush1.msra.mxu0 0.0
    %1013 = vmatprep.subr.mxu0 0.0
    %1014 = vmatpush1.msra.mxu0 0.0
    %1015 = vmatprep.subr.mxu0 0.0
    %1016 = vmatpush1.msra.mxu0 0.0
    %1017 = vmatprep.subr.mxu0 0.0
    %1018 = vmatpush1.msra.mxu0 0.0
    %1019 = vmatprep.subr.mxu0 0.0
    %1020 = vmatpush1.msra.mxu0 0.0
    %1021 = vmatprep.subr.mxu0 0.0
    %1022 = vmatpush1.msra.mxu0 0.0
    %1023 = vmatprep.subr.mxu0 0.0
    %1024 = vmatpush1.msra.mxu0 0.0
    %1025 = vmatprep.subr.mxu0 0.0
    %1026 = vmatpush1.msra.mxu0 0.0
    %1027 = vmatprep.subr.mxu0 0.0
    %1028 = vmatpush1.msra.mxu0 0.0
    %1029 = vmatprep.subr.mxu0 0.0
    %1030 = vmatpush1.msra.mxu0 0.0
    %1031 = vmatprep.subr.mxu0 0.0
    %1032 = vmatpush1.msra.mxu0 0.0
    %1033 = vmatprep.subr.mxu0 0.0
    %1034 = vmatpush1.msra.mxu0 0.0
    %1035 = vmatprep.subr.mxu0 0.0
    %1036 = vmatpush1.msra.mxu0 0.0
    %1037 = vmatprep.subr.mxu0 0.0
    %1038 = vmatpush1.msra.mxu0 0.0
    %1039 = vmatprep.subr.mxu0 0.0
    %1040 = vmatpush1.msra.mxu0 0.0
    %1041 = vmatprep.subr.mxu0 0.0
    %1042 = vmatpush1.msra.mxu0 0.0
    %1043 = vmatprep.subr.mxu0 0.0
    %1044 = vmatpush1.msra.mxu0 0.0
    %1045 = vmatprep.subr.mxu0 0.0
    %1046 = vmatpush1.msra.mxu0 0.0
    %1047 = vmatprep.subr.mxu0 0.0
    %1048 = vmatpush1.msra.mxu0 0.0
    %1049 = vmatprep.subr.mxu0 0.0
    %1050 = vmatpush1.msra.mxu0 0.0
    %1051 = vmatprep.subr.mxu0 0.0
    %1052 = vmatpush1.msra.mxu0 0.0
    %1053 = vmatprep.subr.mxu0 0.0
    %1054 = vmatpush1.msra.mxu0 0.0
    %1055 = vmatprep.subr.mxu0 0.0
    %1056 = vmatpush1.msra.mxu0 0.0
    %1057 = vmatprep.subr.mxu0 0.0
    %1058 = vmatpush1.msra.mxu0 0.0
    %1059 = vmatprep.subr.mxu0 0.0
    %1060 = vmatpush1.msra.mxu0 0.0
    %1061 = vmatprep.subr.mxu0 0.0
    %1062 = vmatpush1.msra.mxu0 0.0
    %1063 = vmatprep.mubr.f32.mxu0 0.0
    %1064 = vmatmul.mubr.f32.gmra.mrb[0].mxu0 %v997
    %v1065 = vpop.f32.mrb[0].mxu0
    %v1066 = vadd.f32 0.0, %v1065
    %v1067 = vpop.f32.mrb[0].mxu0
    %v1068 = vadd.f32 0.0, %v1067
    %1069 = vdwg.mxu0
    %v1070 = vsub.f32 %v924, %v1066
    %v1071 = vsub.f32 %v925, %v1068
    %v1072 = vmul.f32 %v1070, %v1070
    %v1073 = vmul.f32 %v1071, %v1071
    %1074 = vmatprep.subr.mxu0 0.0
    %1075 = vmatpush1.msra.mxu0 %v34
    %1076 = vmatprep.subr.mxu0 0.0
    %1077 = vmatpush1.msra.mxu0 %v35
    %1078 = vmatprep.subr.mxu0 0.0
    %1079 = vmatpush1.msra.mxu0 %v36
    %1080 = vmatprep.subr.mxu0 0.0
    %1081 = vmatpush1.msra.mxu0 %v37
    %1082 = vmatprep.subr.mxu0 0.0
    %1083 = vmatpush1.msra.mxu0 %v38
    %1084 = vmatprep.subr.mxu0 0.0
    %1085 = vmatpush1.msra.mxu0 %v39
    %1086 = vmatprep.subr.mxu0 0.0
    %1087 = vmatpush1.msra.mxu0 %v40
    %1088 = vmatprep.subr.mxu0 0.0
    %1089 = vmatpush1.msra.mxu0 %v41
    %1090 = vmatprep.subr.mxu0 0.0
    %1091 = vmatpush1.msra.mxu0 %v42
    %1092 = vmatprep.subr.mxu0 0.0
    %1093 = vmatpush1.msra.mxu0 %v43
    %1094 = vmatprep.subr.mxu0 0.0
    %1095 = vmatpush1.msra.mxu0 %v44
    %1096 = vmatprep.subr.mxu0 0.0
    %1097 = vmatpush1.msra.mxu0 %v45
    %1098 = vmatprep.subr.mxu0 0.0
    %1099 = vmatpush1.msra.mxu0 %v46
    %1100 = vmatprep.subr.mxu0 0.0
    %1101 = vmatpush1.msra.mxu0 %v47
    %1102 = vmatprep.subr.mxu0 0.0
    %1103 = vmatpush1.msra.mxu0 %v48
    %1104 = vmatprep.subr.mxu0 0.0
    %1105 = vmatpush1.msra.mxu0 %v49
    %1106 = vmatprep.subr.mxu0 0.0
    %1107 = vmatpush1.msra.mxu0 %v50
    %1108 = vmatprep.subr.mxu0 0.0
    %1109 = vmatpush1.msra.mxu0 %v51
    %1110 = vmatprep.subr.mxu0 0.0
    %1111 = vmatpush1.msra.mxu0 %v52
    %1112 = vmatprep.subr.mxu0 0.0
    %1113 = vmatpush1.msra.mxu0 %v53
    %1114 = vmatprep.subr.mxu0 0.0
    %1115 = vmatpush1.msra.mxu0 %v54
    %1116 = vmatprep.subr.mxu0 0.0
    %1117 = vmatpush1.msra.mxu0 %v55
    %1118 = vmatprep.subr.mxu0 0.0
    %1119 = vmatpush1.msra.mxu0 %v56
    %1120 = vmatprep.subr.mxu0 0.0
    %1121 = vmatpush1.msra.mxu0 %v57
    %1122 = vmatprep.subr.mxu0 0.0
    %1123 = vmatpush1.msra.mxu0 %v58
    %1124 = vmatprep.subr.mxu0 0.0
    %1125 = vmatpush1.msra.mxu0 %v59
    %1126 = vmatprep.subr.mxu0 0.0
    %1127 = vmatpush1.msra.mxu0 %v60
    %1128 = vmatprep.subr.mxu0 0.0
    %1129 = vmatpush1.msra.mxu0 %v61
    %1130 = vmatprep.subr.mxu0 0.0
    %1131 = vmatpush1.msra.mxu0 %v62
    %1132 = vmatprep.subr.mxu0 0.0
    %1133 = vmatpush1.msra.mxu0 %v63
    %1134 = vmatprep.subr.mxu0 0.0
    %1135 = vmatpush1.msra.mxu0 %v64
    %1136 = vmatprep.subr.mxu0 0.0
    %1137 = vmatpush1.msra.mxu0 %v65
    %1138 = vmatprep.mubr.f32.mxu0 %v1073
    %1139 = vmatmul.mubr.f32.gmra.mrb[0].mxu0 %v1072
    %v1140 = vpop.f32.mrb[0].mxu0
    %v1141 = vadd.f32 0.0, %v1140
    %v1142 = vpop.f32.mrb[0].mxu0
    %1143 = vdwg.mxu0
    %v1145 = vsel %vm437, %v1141, 0
    %1147 = vmatprep.subr.mxu0 %v67
    %1148 = vmatpush1.msra.mxu0 %v66
    %1149 = vmatprep.subr.mxu0 %v69
    %1150 = vmatpush1.msra.mxu0 %v68
    %1151 = vmatprep.subr.mxu0 0.0
    %1152 = vmatpush1.msra.mxu0 0.0
    %1153 = vmatprep.subr.mxu0 0.0
    %1154 = vmatpush1.msra.mxu0 0.0
    %1155 = vmatprep.subr.mxu0 0.0
    %1156 = vmatpush1.msra.mxu0 0.0
    %1157 = vmatprep.subr.mxu0 0.0
    %1158 = vmatpush1.msra.mxu0 0.0
    %1159 = vmatprep.subr.mxu0 0.0
    %1160 = vmatpush1.msra.mxu0 0.0
    %1161 = vmatprep.subr.mxu0 0.0
    %1162 = vmatpush1.msra.mxu0 0.0
    %1163 = vmatprep.subr.mxu0 0.0
    %1164 = vmatpush1.msra.mxu0 0.0
    %1165 = vmatprep.subr.mxu0 0.0
    %1166 = vmatpush1.msra.mxu0 0.0
    %1167 = vmatprep.subr.mxu0 0.0
    %1168 = vmatpush1.msra.mxu0 0.0
    %1169 = vmatprep.subr.mxu0 0.0
    %1170 = vmatpush1.msra.mxu0 0.0
    %1171 = vmatprep.subr.mxu0 0.0
    %1172 = vmatpush1.msra.mxu0 0.0
    %1173 = vmatprep.subr.mxu0 0.0
    %1174 = vmatpush1.msra.mxu0 0.0
    %1175 = vmatprep.subr.mxu0 0.0
    %1176 = vmatpush1.msra.mxu0 0.0
    %1177 = vmatprep.subr.mxu0 0.0
    %1178 = vmatpush1.msra.mxu0 0.0
    %1179 = vmatprep.subr.mxu0 0.0
    %1180 = vmatpush1.msra.mxu0 0.0
    %1181 = vmatprep.subr.mxu0 0.0
    %1182 = vmatpush1.msra.mxu0 0.0
    %1183 = vmatprep.subr.mxu0 0.0
    %1184 = vmatpush1.msra.mxu0 0.0
    %1185 = vmatprep.subr.mxu0 0.0
    %1186 = vmatpush1.msra.mxu0 0.0
    %1187 = vmatprep.subr.mxu0 0.0
    %1188 = vmatpush1.msra.mxu0 0.0
    %1189 = vmatprep.subr.mxu0 0.0
    %1190 = vmatpush1.msra.mxu0 0.0
    %1191 = vmatprep.subr.mxu0 0.0
    %1192 = vmatpush1.msra.mxu0 0.0
    %1193 = vmatprep.subr.mxu0 0.0
    %1194 = vmatpush1.msra.mxu0 0.0
    %1195 = vmatprep.subr.mxu0 0.0
    %1196 = vmatpush1.msra.mxu0 0.0
    %1197 = vmatprep.subr.mxu0 0.0
    %1198 = vmatpush1.msra.mxu0 0.0
    %1199 = vmatprep.subr.mxu0 0.0
    %1200 = vmatpush1.msra.mxu0 0.0
    %1201 = vmatprep.subr.mxu0 0.0
    %1202 = vmatpush1.msra.mxu0 0.0
    %1203 = vmatprep.subr.mxu0 0.0
    %1204 = vmatpush1.msra.mxu0 0.0
    %1205 = vmatprep.subr.mxu0 0.0
    %1206 = vmatpush1.msra.mxu0 0.0
    %1207 = vmatprep.subr.mxu0 0.0
    %1208 = vmatpush1.msra.mxu0 0.0
    %1209 = vmatprep.subr.mxu0 0.0
    %1210 = vmatpush1.msra.mxu0 0.0
    %1211 = vmatprep.mubr.f32.mxu0 0.0
    %1212 = vmatmul.mubr.f32.gmra.mrb[0].mxu0 %v1145
    %v1213 = vpop.f32.mrb[0].mxu0
    %v1214 = vadd.f32 1e-05, %v1213
    %v1215 = vpop.f32.mrb[0].mxu0
    %v1216 = vadd.f32 1e-05, %v1215
    %1217 = vdwg.mxu0
    %v1218 = vrsqrt.pop %v1214
    %v1219 = vrsqrt.pop %v1216
    %v1220 = vmul.f32 %v1070, %v1218
    %v1221 = vmul.f32 %v1071, %v1219
    %v1222 = vadd.f32 %v1220, %v31
    %v1223 = vadd.f32 %v1221, %v32
    %vm1224 = vcmp.gt.f32.partialorder %v1222, 0.0
    %vm1225 = vcmp.gt.f32.partialorder %v1223, 0.0
    %v1226 = vmul.f32 %v666, %v1222
    %v1227 = vmul.f32 %v666, %v1223
    %v1228 = vsel %vm1224, %v1222, %v1226
    %v1229 = vsel %vm1225, %v1223, %v1227
    %1230 = vst [vmem:[#allocation3] sm:$0xff] %v1228
    %1231 = vst [vmem:[#allocation3 + $0x8] sm:$0xff] %v1229
    // Predicated region
    $region34: #{tpu_custom_call.1} parent=1 // pred_check
      _
    $region35: #{tpu_custom_call.1} parent=1 // pred_check_branch
      %1233 = sbr.rel (0) target = $region37
    $region36: #{tpu_custom_call.1} parent=1 // pred_region
      %s1235 = ssub.s32 256, 256
      %1236 = vsyncadd [#allocation4], %s1235
      %s1238 = sshll.u32 [#allocation3], 4
      %s1239 = int_to_ptr.vmem [resolvable:$true] %s1238
      %1241 = dma.vmem_to_hbm [thread:$0]  %s1239, 256, %s8, [#allocation4]
    $region37: #{tpu_custom_call.1} parent=1 // pred_fallthru
      _
    // Predicated region
    $region38: #{tpu_custom_call.1} parent=1 // pred_check
      _
    $region39: #{tpu_custom_call.1} parent=1 // pred_check_branch
      %1243 = sbr.rel (0) target = $region41
    $region40: #{tpu_custom_call.1} parent=1 // pred_region
      %1244 = dma.done [#allocation4], 256
    $region41: #{tpu_custom_call.1} parent=1 // pred_fallthru
      _
    %1245 = vsyncpa [#allocation4], 1

</llo_original>
